<compile_context>
chip_gen: v7x
topology: tpu7x:2x2x1
jax: 0.10.0
libtpu: 0.0.40
codegen_flags: <defaults>
</compile_context>

<pallas_src>
import jax
import jax.numpy as jnp
from jax.experimental import pallas as pl
from jax.experimental.pallas import tpu as pltpu


# ---------------------------------------------------------------------------
# helpers
# ---------------------------------------------------------------------------
def _round_up(n, m):
    return ((n + m - 1) // m) * m


def _pick_tile(n_pad, pref):
    """Largest multiple of 128 <= pref that divides n_pad (n_pad % 128 == 0)."""
    t = min(pref, n_pad)
    while n_pad % t:
        t -= 128
    return t


def _choose_agg_tiles(n):
    """Pick (n_pad, tm, tk) so the tiles never collapse below 512 for big N."""
    if n <= 512:
        n_pad = _round_up(n, 128)
        return n_pad, n_pad, n_pad
    tm = 512
    n_pad = _round_up(n, tm)            # pad N to the row tile, not just 128
    tk = 1024 if n_pad % 1024 == 0 else 512
    return n_pad, tm, tk


def _pad2(x, rows, cols):
    return jnp.pad(x, ((0, rows - x.shape[0]), (0, cols - x.shape[1])))


def _clamp_vmem(need_bytes):
    # Default scoped VMEM: 16 MiB (v5e) / 32 MiB (v6e, v7x).  Keep explicit
    # override but cap at 48 MiB so bigger tiles still fit v7x's 64 MiB/TC.
    return min(max(32 << 20, int(need_bytes * 1.4)), 48 << 20)


# ---------------------------------------------------------------------------
# Pallas kernel 1: feature transform  XW = X @ W   (row x K grid)
# ---------------------------------------------------------------------------
def _xw_kernel(x_ref, w_ref, o_ref, acc_ref):
    k = pl.program_id(1)

    @pl.when(k == 0)
    def _():
        acc_ref[...] = jnp.zeros_like(acc_ref)

    acc_ref[...] += jnp.dot(
        x_ref[...], w_ref[...], preferred_element_type=jnp.float32
    )

    @pl.when(k == pl.num_programs(1) - 1)
    def _():
        o_ref[...] = acc_ref[...].astype(o_ref.dtype)


def xw_matmul(x, w, *, tm_pref=512, tk_pref=512):
    n_pad, f_in = x.shape
    f_out = w.shape[1]
    tm = _pick_tile(n_pad, tm_pref)
    tk = _pick_tile(f_in, tk_pref)
    n_row_tiles = n_pad // tm

    vmem_need = (2 * tm * tk * 2          # X tile, double-buffered bf16
                 + 2 * tk * f_out * 2     # W tile, double-buffered bf16
                 + 2 * tm * f_out * 2     # output tile bf16
                 + tm * f_out * 4         # f32 accumulator
                 + (1 << 20))

    return pl.pallas_call(
        _xw_kernel,
        out_shape=jax.ShapeDtypeStruct((n_pad, f_out), jnp.bfloat16),
        grid=(n_row_tiles, f_in // tk),
        in_specs=[
            pl.BlockSpec((tm, tk), lambda i, k: (i, k)),
            pl.BlockSpec((tk, f_out), lambda i, k: (k, 0)),
        ],
        out_specs=pl.BlockSpec((tm, f_out), lambda i, k: (i, 0)),
        scratch_shapes=[pltpu.VMEM((tm, f_out), jnp.float32)],
        compiler_params=pltpu.CompilerParams(
            dimension_semantics=("parallel", "arbitrary"),
            vmem_limit_bytes=_clamp_vmem(vmem_need),
        ),
        cost_estimate=pl.CostEstimate(
            flops=2 * n_pad * f_in * f_out,
            transcendentals=0,
            bytes_accessed=(2 * n_pad * f_in
                            + 2 * f_in * f_out * n_row_tiles
                            + 2 * n_pad * f_out),
        ),
    )(x, w)


# ---------------------------------------------------------------------------
# Pallas kernel 2: aggregation  out = relu(A_hat @ XW + b)
#   XW is VMEM-resident (constant index map) when it fits; the f32-output
#   variant accumulates directly into the resident output block (no scratch).
# ---------------------------------------------------------------------------
_XW_RESIDENT_BYTES_MAX = 8 << 20   # single-copy budget (~16 MiB double-buffered)


def _make_agg_kernel(tk, resident_xw, use_scratch):
    def _xw_tile(xw_ref, k):
        if resident_xw:
            start = pl.multiple_of(k * tk, 128)
            return xw_ref[pl.ds(start, tk), :]
        return xw_ref[...]

    if use_scratch:
        def kernel(a_ref, xw_ref, b_ref, o_ref, acc_ref):
            k = pl.program_id(1)

            @pl.when(k == 0)
            def _():
                acc_ref[...] = jnp.zeros_like(acc_ref)

            acc_ref[...] += jnp.dot(
                a_ref[...], _xw_tile(xw_ref, k),
                preferred_element_type=jnp.float32,
            )

            @pl.when(k == pl.num_programs(1) - 1)
            def _():
                o_ref[...] = jnp.maximum(
                    acc_ref[...] + b_ref[...], 0.0
                ).astype(o_ref.dtype)

        return kernel

    def kernel(a_ref, xw_ref, b_ref, o_ref):
        k = pl.program_id(1)

        @pl.when(k == 0)
        def _():
            o_ref[...] = jnp.zeros_like(o_ref)

        o_ref[...] += jnp.dot(
            a_ref[...], _xw_tile(xw_ref, k),
            preferred_element_type=jnp.float32,
        )

        @pl.when(k == pl.num_programs(1) - 1)
        def _():
            o_ref[...] = jnp.maximum(
                o_ref[...] + b_ref[...], 0.0
            ).astype(o_ref.dtype)

    return kernel


def gcn_aggregate(a_hat, xw, b, *, out_dtype=jnp.float32, tm=None, tk=None):
    n_pad = a_hat.shape[0]
    f_out = xw.shape[1]
    if tm is None:
        tm = _pick_tile(n_pad, 512)
    if tk is None:
        tk = _pick_tile(n_pad, 1024)
    out_itemsize = jnp.dtype(out_dtype).itemsize

    # Keep XW resident in VMEM unless it is too large (v7x: 64 MiB/TC).
    xw_bytes = n_pad * f_out * 2
    resident_xw = xw_bytes <= _XW_RESIDENT_BYTES_MAX
    # f32 output: accumulate in-place into the resident output block.
    use_scratch = jnp.dtype(out_dtype) != jnp.dtype(jnp.float32)

    kernel = _make_agg_kernel(tk, resident_xw, use_scratch)

    if resident_xw:
        xw_spec = pl.BlockSpec((n_pad, f_out), lambda i, k: (0, 0))
        xw_traffic = xw_bytes                      # fetched once
        xw_vmem = 2 * xw_bytes                     # budget for buffering
    else:
        xw_spec = pl.BlockSpec((tk, f_out), lambda i, k: (k, 0))
        xw_traffic = (n_pad // tm) * n_pad * f_out * 2
        xw_vmem = 2 * tk * f_out * 2

    scratch = [pltpu.VMEM((tm, f_out), jnp.float32)] if use_scratch else []

    vmem_need = (2 * tm * tk * 2                      # A tile, double-buffered bf16
                 + xw_vmem
                 + 2 * tm * f_out * out_itemsize      # output tile
                 + (tm * f_out * 4 if use_scratch else 0)
                 + (1 << 20))

    return pl.pallas_call(
        kernel,
        out_shape=jax.ShapeDtypeStruct((n_pad, f_out), out_dtype),
        grid=(n_pad // tm, n_pad // tk),
        in_specs=[
            pl.BlockSpec((tm, tk), lambda i, k: (i, k)),      # A_hat tile (bf16)
            xw_spec,                                          # XW (bf16)
            pl.BlockSpec((1, f_out), lambda i, k: (0, 0)),    # bias (f32)
        ],
        out_specs=pl.BlockSpec((tm, f_out), lambda i, k: (i, 0)),
        scratch_shapes=scratch,
        compiler_params=pltpu.CompilerParams(
            dimension_semantics=("parallel", "arbitrary"),
            vmem_limit_bytes=_clamp_vmem(vmem_need),
        ),
        cost_estimate=pl.CostEstimate(
            flops=2 * n_pad * n_pad * f_out,
            transcendentals=0,
            bytes_accessed=(2 * n_pad * n_pad + xw_traffic + 4 * f_out
                            + n_pad * f_out * out_itemsize),
        ),
    )(a_hat, xw, b)


# ---------------------------------------------------------------------------
# Plain-JAX glue: GCN normalization (dense), parameter init, forward
# ---------------------------------------------------------------------------
def gcn_norm_dense(edge_index, num_nodes):
    """Dense D^-1/2 (A + I) D^-1/2, matching PyG gcn_norm(add_self_loops=True)."""
    src = edge_index[0]
    dst = edge_index[1]
    a = jnp.zeros((num_nodes, num_nodes), jnp.float32)
    # out[i] aggregates messages from sources j of edges (j -> i): A[i, j] = 1
    a = a.at[dst, src].add(1.0)
    a = a + jnp.eye(num_nodes, dtype=jnp.float32)  # self-loops
    deg = a.sum(axis=1)
    dinv = jnp.where(deg > 0.0, jax.lax.rsqrt(deg), 0.0)
    return dinv[:, None] * a * dinv[None, :]


def init_params(key, c_in, c_out):
    """GCNConv init: glorot weights, zero bias (deterministic via PRNGKey)."""
    hidden = 2 * c_in
    k1, k2 = jax.random.split(key)

    def glorot(k, fan_in, fan_out):
        limit = jnp.sqrt(6.0 / (fan_in + fan_out))
        return jax.random.uniform(k, (fan_in, fan_out), jnp.float32, -limit, limit)

    return {
        "w1": glorot(k1, c_in, hidden),
        "b1": jnp.zeros((hidden,), jnp.float32),
        "w2": glorot(k2, hidden, c_out),
        "b2": jnp.zeros((c_out,), jnp.float32),
    }


@jax.jit
def gcn_dcaug_forward(params, x, edge_index):
    """Forward pass of GCN_dcaug (eval mode: dropout == identity)."""
    n, c_in = x.shape
    hidden = params["w1"].shape[1]
    c_out = params["w2"].shape[1]

    n_pad, tm, tk = _choose_agg_tiles(n)
    f_in_pad = _round_up(c_in, 128)
    f_h_pad = _round_up(hidden, 128)
    f_out_pad = _round_up(c_out, 128)

    # Under jit the normalization fuses with the pad + bf16 cast -> A_hat is
    # emitted once as bf16 (no f32 N^2 HBM round-trip).
    a_p = _pad2(gcn_norm_dense(edge_index, n), n_pad, n_pad).astype(jnp.bfloat16)
    x_p = _pad2(x, n_pad, f_in_pad).astype(jnp.bfloat16)
    w1_p = _pad2(params["w1"], f_in_pad, f_h_pad).astype(jnp.bfloat16)
    b1_p = jnp.pad(params["b1"], (0, f_h_pad - hidden)).reshape(1, f_h_pad)
    w2_p = _pad2(params["w2"], f_h_pad, f_out_pad).astype(jnp.bfloat16)
    b2_p = jnp.pad(params["b2"], (0, f_out_pad - c_out)).reshape(1, f_out_pad)

    # dropout (eval) -> identity
    xw1 = xw_matmul(x_p, w1_p)                                           # (n_pad, f_h_pad) bf16
    h = gcn_aggregate(a_p, xw1, b1_p, out_dtype=jnp.bfloat16, tm=tm, tk=tk)   # conv1 + relu
    # dropout (eval) -> identity
    xw2 = xw_matmul(h, w2_p)                                             # (n_pad, f_out_pad) bf16
    out = gcn_aggregate(a_p, xw2, b2_p, out_dtype=jnp.float32, tm=tm, tk=tk)  # conv2 + relu

    return out[:n, :c_out]


# ---------------------------------------------------------------------------
# References (pure jnp) for sanity checks
# ---------------------------------------------------------------------------
def gcn_dcaug_reference_bf16(params, x, edge_index):
    """Same bf16-input / f32-accumulate quantization as the kernel path."""
    n = x.shape[0]
    a = gcn_norm_dense(edge_index, n).astype(jnp.bfloat16)
    xb = x.astype(jnp.bfloat16)
    w1 = params["w1"].astype(jnp.bfloat16)
    w2 = params["w2"].astype(jnp.bfloat16)
    xw1 = jnp.dot(xb, w1, preferred_element_type=jnp.float32).astype(jnp.bfloat16)
    h = jnp.maximum(
        jnp.dot(a, xw1, preferred_element_type=jnp.float32) + params["b1"], 0.0
    ).astype(jnp.bfloat16)
    xw2 = jnp.dot(h, w2, preferred_element_type=jnp.float32).astype(jnp.bfloat16)
    return jnp.maximum(
        jnp.dot(a, xw2, preferred_element_type=jnp.float32) + params["b2"], 0.0
    )


def gcn_dcaug_reference_f32(params, x, edge_index):
    n = x.shape[0]
    a_hat = gcn_norm_dense(edge_index, n)
    h = jnp.maximum(a_hat @ (x @ params["w1"]) + params["b1"], 0.0)
    return jnp.maximum(a_hat @ (h @ params["w2"]) + params["b2"], 0.0)


if __name__ == "__main__":
    key = jax.random.PRNGKey(0)
    k_x, k_e, k_p = jax.random.split(key, 3)

    num_nodes = 16
    c_in = 8
    c_out = 4
    dropout = 0.5  # unused in eval mode

    # Node features (N, c_in)
    x = jax.random.normal(k_x, (num_nodes, c_in), dtype=jnp.float32)

    # Random undirected edge list (2, E), made symmetric.
    num_raw_edges = 24
    src = jax.random.randint(k_e, (num_raw_edges,), 0, num_nodes)
    dst = jax.random.randint(
        jax.random.fold_in(k_e, 1), (num_raw_edges,), 0, num_nodes
    )
    edge_index = jnp.stack(
        [jnp.concatenate([src, dst]), jnp.concatenate([dst, src])], axis=0
    ).astype(jnp.int32)

    params = init_params(k_p, c_in, c_out)

    out = gcn_dcaug_forward(params, x, edge_index)
    out = jax.block_until_ready(out)
    assert out.shape == (num_nodes, c_out)

    # Exact-ish check against a quantization-matched jnp reference.
    ref_q = gcn_dcaug_reference_bf16(params, x, edge_index)
    assert jnp.allclose(out, ref_q, atol=1e-3, rtol=1e-3)

    # Loose semantic sanity check against the full-f32 reference.
    ref_f = gcn_dcaug_reference_f32(params, x, edge_index)
    assert jnp.allclose(out, ref_f, atol=5e-2, rtol=5e-2)

    print("KERNEL_OK")
</pallas_src>

<mosaic_0001>
module attributes {stable_mosaic.version = 11 : i64} {
  func.func private @main(%arg0: i32) attributes {dimension_semantics = [#tpu.dimension_semantics<core_parallel>], iteration_bounds = array<i64: 2>, tpu.core_type = #tpu.core_type<sc_scalar_subcore>, window_params = []} {
    return
  }
}

module attributes {stable_mosaic.version = 11 : i64} {
  func.func private @main(%arg0: i32) attributes {dimension_semantics = [#tpu.dimension_semantics<core_parallel>], iteration_bounds = array<i64: 2>, tpu.core_type = #tpu.core_type<sc_scalar_subcore>, window_params = []} {
    return
  }
}

module attributes {stable_mosaic.version = 11 : i64} {
  func.func @_xw_kernel(%arg0: i32, %arg1: i32, %arg2: memref<128x128xbf16, #tpu.memory_space<vmem>>, %arg3: memref<128x128xbf16, #tpu.memory_space<vmem>>, %arg4: memref<128x128xbf16, #tpu.memory_space<vmem>>, %arg5: memref<128x128xf32, #tpu.memory_space<vmem>>) attributes {dimension_semantics = [#tpu.dimension_semantics<parallel>, #tpu.dimension_semantics<arbitrary>], iteration_bounds = array<i64: 1, 1>, scalar_prefetch = 0 : i64, scratch_operands = 1 : i64, tpu.core_type = #tpu.core_type<tc>, window_params = [{transform_indices = @transform_0, window_bounds = array<i64: 128, 128>}, {transform_indices = @transform_1, window_bounds = array<i64: 128, 128>}, {transform_indices = @transform_2, window_bounds = array<i64: 128, 128>}]} {
    %c0_i32 = arith.constant 0 : i32
    %0 = arith.cmpi eq, %arg1, %c0_i32 : i32
    %1 = arith.extui %0 : i1 to i32
    %c0_i32_0 = arith.constant 0 : i32
    %2 = arith.cmpi ne, %1, %c0_i32_0 : i32
    scf.if %2 {
      %cst_10 = arith.constant 0.000000e+00 : f32
      %12 = vector.broadcast %cst_10 : f32 to vector<128x128xf32>
      %c0_11 = arith.constant 0 : index
      %c0_12 = arith.constant 0 : index
      %13 = vector.load %arg5[%c0_11, %c0_12] : memref<128x128xf32, #tpu.memory_space<vmem>>, vector<128x128xf32>
      tpu.vector_store %arg5[%c0_11, %c0_12], %12 {strides = array<i32>} : memref<128x128xf32, #tpu.memory_space<vmem>>, vector<128x128xf32>,
    } else {
    }
    %c0 = arith.constant 0 : index
    %c0_1 = arith.constant 0 : index
    %3 = vector.load %arg5[%c0, %c0_1] : memref<128x128xf32, #tpu.memory_space<vmem>>, vector<128x128xf32>
    %c0_2 = arith.constant 0 : index
    %c0_3 = arith.constant 0 : index
    %4 = vector.load %arg2[%c0_2, %c0_3] : memref<128x128xbf16, #tpu.memory_space<vmem>>, vector<128x128xbf16>
    %c0_4 = arith.constant 0 : index
    %c0_5 = arith.constant 0 : index
    %5 = vector.load %arg3[%c0_4, %c0_5] : memref<128x128xbf16, #tpu.memory_space<vmem>>, vector<128x128xbf16>
    %cst = arith.constant dense<0.000000e+00> : vector<128x128xf32>
    %6 = tpu.matmul %4, %5, %cst {dimension_numbers = #tpu.dot_dimension_numbers<[1], [0], [0], [1], [0, 0, 1, 1], [], []>} : vector<128x128xbf16>, vector<128x128xbf16>, vector<128x128xf32> -> vector<128x128xf32>
    %7 = arith.addf %3, %6 : vector<128x128xf32>
    %c0_6 = arith.constant 0 : index
    %c0_7 = arith.constant 0 : index
    %8 = vector.load %arg5[%c0_6, %c0_7] : memref<128x128xf32, #tpu.memory_space<vmem>>, vector<128x128xf32>
    tpu.vector_store %arg5[%c0_6, %c0_7], %7 {strides = array<i32>} : memref<128x128xf32, #tpu.memory_space<vmem>>, vector<128x128xf32>,
    %c0_i32_8 = arith.constant 0 : i32
    %9 = arith.cmpi eq, %arg1, %c0_i32_8 : i32
    %10 = arith.extui %9 : i1 to i32
    %c0_i32_9 = arith.constant 0 : i32
    %11 = arith.cmpi ne, %10, %c0_i32_9 : i32
    scf.if %11 {
      %c0_10 = arith.constant 0 : index
      %c0_11 = arith.constant 0 : index
      %12 = vector.load %arg5[%c0_10, %c0_11] : memref<128x128xf32, #tpu.memory_space<vmem>>, vector<128x128xf32>
      %13 = arith.truncf %12 : vector<128x128xf32> to vector<128x128xbf16>
      %c0_12 = arith.constant 0 : index
      %c0_13 = arith.constant 0 : index
      %14 = vector.load %arg4[%c0_12, %c0_13] : memref<128x128xbf16, #tpu.memory_space<vmem>>, vector<128x128xbf16>
      tpu.vector_store %arg4[%c0_12, %c0_13], %13 {strides = array<i32>} : memref<128x128xbf16, #tpu.memory_space<vmem>>, vector<128x128xbf16>,
    } else {
    }
    return
  }
  func.func @transform_0(%arg0: i32, %arg1: i32) -> (i32, i32) {
    %c0_i32 = arith.constant 0 : i32
    return %arg0, %arg1 : i32, i32
  }
  func.func @transform_1(%arg0: i32, %arg1: i32) -> (i32, i32) {
    %c0_i32 = arith.constant 0 : i32
    %c0_i32_0 = arith.constant 0 : i32
    return %arg1, %c0_i32 : i32, i32
  }
  func.func @transform_2(%arg0: i32, %arg1: i32) -> (i32, i32) {
    %c0_i32 = arith.constant 0 : i32
    %c0_i32_0 = arith.constant 0 : i32
    return %arg0, %c0_i32 : i32, i32
  }
}

module attributes {stable_mosaic.version = 11 : i64} {
  func.func @kernel(%arg0: i32, %arg1: i32, %arg2: memref<128x128xbf16, #tpu.memory_space<vmem>>, %arg3: memref<128x128xbf16, #tpu.memory_space<vmem>>, %arg4: memref<1x128xf32, #tpu.memory_space<vmem>>, %arg5: memref<128x128xbf16, #tpu.memory_space<vmem>>, %arg6: memref<128x128xf32, #tpu.memory_space<vmem>>) attributes {dimension_semantics = [#tpu.dimension_semantics<parallel>, #tpu.dimension_semantics<arbitrary>], iteration_bounds = array<i64: 1, 1>, scalar_prefetch = 0 : i64, scratch_operands = 1 : i64, tpu.core_type = #tpu.core_type<tc>, window_params = [{transform_indices = @transform_0, window_bounds = array<i64: 128, 128>}, {pipeline_mode = #tpu.pipeline_mode<synchronous>, transform_indices = @transform_1, window_bounds = array<i64: 128, 128>}, {pipeline_mode = #tpu.pipeline_mode<synchronous>, transform_indices = @transform_2, window_bounds = array<i64: 1, 128>}, {transform_indices = @transform_3, window_bounds = array<i64: 128, 128>}]} {
    %c0_i32 = arith.constant 0 : i32
    %0 = arith.cmpi eq, %arg1, %c0_i32 : i32
    %1 = arith.extui %0 : i1 to i32
    %c0_i32_0 = arith.constant 0 : i32
    %2 = arith.cmpi ne, %1, %c0_i32_0 : i32
    scf.if %2 {
      %cst_9 = arith.constant 0.000000e+00 : f32
      %15 = vector.broadcast %cst_9 : f32 to vector<128x128xf32>
      %c0_10 = arith.constant 0 : index
      %c0_11 = arith.constant 0 : index
      %16 = vector.load %arg6[%c0_10, %c0_11] : memref<128x128xf32, #tpu.memory_space<vmem>>, vector<128x128xf32>
      tpu.vector_store %arg6[%c0_10, %c0_11], %15 {strides = array<i32>} : memref<128x128xf32, #tpu.memory_space<vmem>>, vector<128x128xf32>,
    } else {
    }
    %c0 = arith.constant 0 : index
    %c0_1 = arith.constant 0 : index
    %3 = vector.load %arg6[%c0, %c0_1] : memref<128x128xf32, #tpu.memory_space<vmem>>, vector<128x128xf32>
    %c0_2 = arith.constant 0 : index
    %c0_3 = arith.constant 0 : index
    %4 = vector.load %arg2[%c0_2, %c0_3] : memref<128x128xbf16, #tpu.memory_space<vmem>>, vector<128x128xbf16>
    %c128_i32 = arith.constant 128 : i32
    %5 = arith.muli %arg1, %c128_i32 : i32
    %6 = tpu.assume_multiple %5, 128 : i32
    %7 = arith.index_cast %6 : i32 to index
    %c0_4 = arith.constant 0 : index
    %8 = vector.load %arg3[%7, %c0_4] : memref<128x128xbf16, #tpu.memory_space<vmem>>, vector<128x128xbf16>
    %cst = arith.constant dense<0.000000e+00> : vector<128x128xf32>
    %9 = tpu.matmul %4, %8, %cst {dimension_numbers = #tpu.dot_dimension_numbers<[1], [0], [0], [1], [0, 0, 1, 1], [], []>} : vector<128x128xbf16>, vector<128x128xbf16>, vector<128x128xf32> -> vector<128x128xf32>
    %10 = arith.addf %3, %9 : vector<128x128xf32>
    %c0_5 = arith.constant 0 : index
    %c0_6 = arith.constant 0 : index
    %11 = vector.load %arg6[%c0_5, %c0_6] : memref<128x128xf32, #tpu.memory_space<vmem>>, vector<128x128xf32>
    tpu.vector_store %arg6[%c0_5, %c0_6], %10 {strides = array<i32>} : memref<128x128xf32, #tpu.memory_space<vmem>>, vector<128x128xf32>,
    %c0_i32_7 = arith.constant 0 : i32
    %12 = arith.cmpi eq, %arg1, %c0_i32_7 : i32
    %13 = arith.extui %12 : i1 to i32
    %c0_i32_8 = arith.constant 0 : i32
    %14 = arith.cmpi ne, %13, %c0_i32_8 : i32
    scf.if %14 {
      %c0_9 = arith.constant 0 : index
      %c0_10 = arith.constant 0 : index
      %15 = vector.load %arg6[%c0_9, %c0_10] : memref<128x128xf32, #tpu.memory_space<vmem>>, vector<128x128xf32>
      %c0_11 = arith.constant 0 : index
      %c0_12 = arith.constant 0 : index
      %16 = vector.load %arg4[%c0_11, %c0_12] : memref<1x128xf32, #tpu.memory_space<vmem>>, vector<1x128xf32>
      %17 = vector.broadcast %16 : vector<1x128xf32> to vector<128x128xf32>
      %18 = arith.addf %15, %17 : vector<128x128xf32>
      %cst_13 = arith.constant 0.000000e+00 : f32
      %19 = vector.broadcast %cst_13 : f32 to vector<128x128xf32>
      %20 = arith.maximumf %18, %19 : vector<128x128xf32>
      %21 = arith.truncf %20 : vector<128x128xf32> to vector<128x128xbf16>
      %c0_14 = arith.constant 0 : index
      %c0_15 = arith.constant 0 : index
      %22 = vector.load %arg5[%c0_14, %c0_15] : memref<128x128xbf16, #tpu.memory_space<vmem>>, vector<128x128xbf16>
      tpu.vector_store %arg5[%c0_14, %c0_15], %21 {strides = array<i32>} : memref<128x128xbf16, #tpu.memory_space<vmem>>, vector<128x128xbf16>,
    } else {
    }
    return
  }
  func.func @transform_0(%arg0: i32, %arg1: i32) -> (i32, i32) {
    %c0_i32 = arith.constant 0 : i32
    return %arg0, %arg1 : i32, i32
  }
  func.func @transform_1(%arg0: i32, %arg1: i32) -> (i32, i32) {
    %c0_i32 = arith.constant 0 : i32
    %c0_i32_0 = arith.constant 0 : i32
    %c0_i32_1 = arith.constant 0 : i32
    return %c0_i32, %c0_i32_0 : i32, i32
  }
  func.func @transform_2(%arg0: i32, %arg1: i32) -> (i32, i32) {
    %c0_i32 = arith.constant 0 : i32
    %c0_i32_0 = arith.constant 0 : i32
    %c0_i32_1 = arith.constant 0 : i32
    return %c0_i32, %c0_i32_0 : i32, i32
  }
  func.func @transform_3(%arg0: i32, %arg1: i32) -> (i32, i32) {
    %c0_i32 = arith.constant 0 : i32
    %c0_i32_0 = arith.constant 0 : i32
    return %arg0, %c0_i32 : i32, i32
  }
}

module attributes {stable_mosaic.version = 11 : i64} {
  func.func @kernel(%arg0: i32, %arg1: i32, %arg2: memref<128x128xbf16, #tpu.memory_space<vmem>>, %arg3: memref<128x128xbf16, #tpu.memory_space<vmem>>, %arg4: memref<1x128xf32, #tpu.memory_space<vmem>>, %arg5: memref<128x128xf32, #tpu.memory_space<vmem>>) attributes {dimension_semantics = [#tpu.dimension_semantics<parallel>, #tpu.dimension_semantics<arbitrary>], iteration_bounds = array<i64: 1, 1>, scalar_prefetch = 0 : i64, scratch_operands = 0 : i64, tpu.core_type = #tpu.core_type<tc>, window_params = [{transform_indices = @transform_0, window_bounds = array<i64: 128, 128>}, {pipeline_mode = #tpu.pipeline_mode<synchronous>, transform_indices = @transform_1, window_bounds = array<i64: 128, 128>}, {pipeline_mode = #tpu.pipeline_mode<synchronous>, transform_indices = @transform_2, window_bounds = array<i64: 1, 128>}, {transform_indices = @transform_3, window_bounds = array<i64: 128, 128>}]} {
    %c0_i32 = arith.constant 0 : i32
    %0 = arith.cmpi eq, %arg1, %c0_i32 : i32
    %1 = arith.extui %0 : i1 to i32
    %c0_i32_0 = arith.constant 0 : i32
    %2 = arith.cmpi ne, %1, %c0_i32_0 : i32
    scf.if %2 {
      %cst_9 = arith.constant 0.000000e+00 : f32
      %15 = vector.broadcast %cst_9 : f32 to vector<128x128xf32>
      %c0_10 = arith.constant 0 : index
      %c0_11 = arith.constant 0 : index
      %16 = vector.load %arg5[%c0_10, %c0_11] : memref<128x128xf32, #tpu.memory_space<vmem>>, vector<128x128xf32>
      tpu.vector_store %arg5[%c0_10, %c0_11], %15 {strides = array<i32>} : memref<128x128xf32, #tpu.memory_space<vmem>>, vector<128x128xf32>,
    } else {
    }
    %c0 = arith.constant 0 : index
    %c0_1 = arith.constant 0 : index
    %3 = vector.load %arg5[%c0, %c0_1] : memref<128x128xf32, #tpu.memory_space<vmem>>, vector<128x128xf32>
    %c0_2 = arith.constant 0 : index
    %c0_3 = arith.constant 0 : index
    %4 = vector.load %arg2[%c0_2, %c0_3] : memref<128x128xbf16, #tpu.memory_space<vmem>>, vector<128x128xbf16>
    %c128_i32 = arith.constant 128 : i32
    %5 = arith.muli %arg1, %c128_i32 : i32
    %6 = tpu.assume_multiple %5, 128 : i32
    %7 = arith.index_cast %6 : i32 to index
    %c0_4 = arith.constant 0 : index
    %8 = vector.load %arg3[%7, %c0_4] : memref<128x128xbf16, #tpu.memory_space<vmem>>, vector<128x128xbf16>
    %cst = arith.constant dense<0.000000e+00> : vector<128x128xf32>
    %9 = tpu.matmul %4, %8, %cst {dimension_numbers = #tpu.dot_dimension_numbers<[1], [0], [0], [1], [0, 0, 1, 1], [], []>} : vector<128x128xbf16>, vector<128x128xbf16>, vector<128x128xf32> -> vector<128x128xf32>
    %10 = arith.addf %3, %9 : vector<128x128xf32>
    %c0_5 = arith.constant 0 : index
    %c0_6 = arith.constant 0 : index
    %11 = vector.load %arg5[%c0_5, %c0_6] : memref<128x128xf32, #tpu.memory_space<vmem>>, vector<128x128xf32>
    tpu.vector_store %arg5[%c0_5, %c0_6], %10 {strides = array<i32>} : memref<128x128xf32, #tpu.memory_space<vmem>>, vector<128x128xf32>,
    %c0_i32_7 = arith.constant 0 : i32
    %12 = arith.cmpi eq, %arg1, %c0_i32_7 : i32
    %13 = arith.extui %12 : i1 to i32
    %c0_i32_8 = arith.constant 0 : i32
    %14 = arith.cmpi ne, %13, %c0_i32_8 : i32
    scf.if %14 {
      %c0_9 = arith.constant 0 : index
      %c0_10 = arith.constant 0 : index
      %15 = vector.load %arg5[%c0_9, %c0_10] : memref<128x128xf32, #tpu.memory_space<vmem>>, vector<128x128xf32>
      %c0_11 = arith.constant 0 : index
      %c0_12 = arith.constant 0 : index
      %16 = vector.load %arg4[%c0_11, %c0_12] : memref<1x128xf32, #tpu.memory_space<vmem>>, vector<1x128xf32>
      %17 = vector.broadcast %16 : vector<1x128xf32> to vector<128x128xf32>
      %18 = arith.addf %15, %17 : vector<128x128xf32>
      %cst_13 = arith.constant 0.000000e+00 : f32
      %19 = vector.broadcast %cst_13 : f32 to vector<128x128xf32>
      %20 = arith.maximumf %18, %19 : vector<128x128xf32>
      %c0_14 = arith.constant 0 : index
      %c0_15 = arith.constant 0 : index
      %21 = vector.load %arg5[%c0_14, %c0_15] : memref<128x128xf32, #tpu.memory_space<vmem>>, vector<128x128xf32>
      tpu.vector_store %arg5[%c0_14, %c0_15], %20 {strides = array<i32>} : memref<128x128xf32, #tpu.memory_space<vmem>>, vector<128x128xf32>,
    } else {
    }
    return
  }
  func.func @transform_0(%arg0: i32, %arg1: i32) -> (i32, i32) {
    %c0_i32 = arith.constant 0 : i32
    return %arg0, %arg1 : i32, i32
  }
  func.func @transform_1(%arg0: i32, %arg1: i32) -> (i32, i32) {
    %c0_i32 = arith.constant 0 : i32
    %c0_i32_0 = arith.constant 0 : i32
    %c0_i32_1 = arith.constant 0 : i32
    return %c0_i32, %c0_i32_0 : i32, i32
  }
  func.func @transform_2(%arg0: i32, %arg1: i32) -> (i32, i32) {
    %c0_i32 = arith.constant 0 : i32
    %c0_i32_0 = arith.constant 0 : i32
    %c0_i32_1 = arith.constant 0 : i32
    return %c0_i32, %c0_i32_0 : i32, i32
  }
  func.func @transform_3(%arg0: i32, %arg1: i32) -> (i32, i32) {
    %c0_i32 = arith.constant 0 : i32
    %c0_i32_0 = arith.constant 0 : i32
    return %arg0, %c0_i32 : i32, i32
  }
}

</mosaic_0001>

<llo_original>
// kernel: gcn_dcaug_forward.4
$region0: #{gcn_dcaug_forward.4}
  #allocation0 [shape = 'u32[]', space=smem, size = 0x4, offset = 0x4, fixed_abs, tag = 'smem constant byte address 0x4 - core index']
  #allocation1 [shape = 'u32[144,128]{1,0:T(1,128)}', space=vmem, size = 0x12000, scoped, tag = 'internal scratch']
  #allocation2 [shape = 'f32[128,128]{1,0:T(8,128)}', space=vmem, size = 0x10000, scoped, tag = 'scratch operand']
  %s0 = inlined_call_operand.vmem [shape: bf16[128,128], index: 0, kind: input, shape index: {}]
  %s1 = inlined_call_operand.vmem [shape: bf16[128,128], index: 1, kind: input, shape index: {}]
  %s2 = inlined_call_operand.vmem [shape: bf16[128,128], index: 2, kind: output, shape index: {}]
  %s3 = sld [smem:[#allocation0]]
  $region26: #{gcn_dcaug_forward.4} parent=0
    _
  %s5 = ssub.s32 1, %s3
  %s6 = scalar_select 0, %s5, %s3
  // Predicated region
  $region2: #{gcn_dcaug_forward.4} parent=0 // pred_check
    _
  $region3: #{gcn_dcaug_forward.4} parent=0 // pred_check_branch
    %8 = sbr.rel (0) target = $region5
  $region4: #{gcn_dcaug_forward.4} parent=0 // pred_region
    _
  $region5: #{gcn_dcaug_forward.4} parent=0 // pred_fallthru
    _
  // Predicated region
  $region6: #{gcn_dcaug_forward.4} parent=0 // pred_check
    _
  $region7: #{gcn_dcaug_forward.4} parent=0 // pred_check_branch
    %10 = sbr.rel (0) target = $region9
  $region8: #{gcn_dcaug_forward.4} parent=0 // pred_region
    _
  $region9: #{gcn_dcaug_forward.4} parent=0 // pred_fallthru
    _
  %p12 = scmp.eq.s32.totalorder 0, 0
  // Predicated region
  $region10: #{gcn_dcaug_forward.4} parent=0 // pred_check
    %p13 = pneg %p12
  $region11: #{gcn_dcaug_forward.4} parent=0 // pred_check_branch
    %15 = sbr.rel (%p13) target = $region13
  $region12: #{gcn_dcaug_forward.4} parent=0 // pred_region
    %16 = vst [vmem:[#allocation2] sm:$0xff] 0.0
    %17 = vst [vmem:[#allocation2 + $0x8] sm:$0xff] 0.0
    %18 = vst [vmem:[#allocation2 + $0x10] sm:$0xff] 0.0
    %19 = vst [vmem:[#allocation2 + $0x18] sm:$0xff] 0.0
    %20 = vst [vmem:[#allocation2 + $0x20] sm:$0xff] 0.0
    %21 = vst [vmem:[#allocation2 + $0x28] sm:$0xff] 0.0
    %22 = vst [vmem:[#allocation2 + $0x30] sm:$0xff] 0.0
    %23 = vst [vmem:[#allocation2 + $0x38] sm:$0xff] 0.0
    %24 = vst [vmem:[#allocation2 + $0x40] sm:$0xff] 0.0
    %25 = vst [vmem:[#allocation2 + $0x48] sm:$0xff] 0.0
    %26 = vst [vmem:[#allocation2 + $0x50] sm:$0xff] 0.0
    %27 = vst [vmem:[#allocation2 + $0x58] sm:$0xff] 0.0
    %28 = vst [vmem:[#allocation2 + $0x60] sm:$0xff] 0.0
    %29 = vst [vmem:[#allocation2 + $0x68] sm:$0xff] 0.0
    %30 = vst [vmem:[#allocation2 + $0x70] sm:$0xff] 0.0
    %31 = vst [vmem:[#allocation2 + $0x78] sm:$0xff] 0.0
  $region13: #{gcn_dcaug_forward.4} parent=0 // pred_fallthru
    _
  %v32 = vld [vmem:[#allocation2] sm:$0xff]
  %v33 = vld [vmem:[#allocation2 + $0x8] sm:$0xff]
  %v34 = vld [vmem:[#allocation2 + $0x10] sm:$0xff]
  %v35 = vld [vmem:[#allocation2 + $0x18] sm:$0xff]
  %v36 = vld [vmem:[#allocation2 + $0x20] sm:$0xff]
  %v37 = vld [vmem:[#allocation2 + $0x28] sm:$0xff]
  %v38 = vld [vmem:[#allocation2 + $0x30] sm:$0xff]
  %v39 = vld [vmem:[#allocation2 + $0x38] sm:$0xff]
  %v40 = vld [vmem:[#allocation2 + $0x40] sm:$0xff]
  %v41 = vld [vmem:[#allocation2 + $0x48] sm:$0xff]
  %v42 = vld [vmem:[#allocation2 + $0x50] sm:$0xff]
  %v43 = vld [vmem:[#allocation2 + $0x58] sm:$0xff]
  %v44 = vld [vmem:[#allocation2 + $0x60] sm:$0xff]
  %v45 = vld [vmem:[#allocation2 + $0x68] sm:$0xff]
  %v46 = vld [vmem:[#allocation2 + $0x70] sm:$0xff]
  %v47 = vld [vmem:[#allocation2 + $0x78] sm:$0xff]
  %v48 = vld [vmem:[%s0] sm:$0xf]
  %v49 = vld [vmem:[%s0 + $0x4] sm:$0xf]
  %v50 = vld [vmem:[%s0 + $0x8] sm:$0xf]
  %v51 = vld [vmem:[%s0 + $0xc] sm:$0xf]
  %v52 = vld [vmem:[%s0 + $0x10] sm:$0xf]
  %v53 = vld [vmem:[%s0 + $0x14] sm:$0xf]
  %v54 = vld [vmem:[%s0 + $0x18] sm:$0xf]
  %v55 = vld [vmem:[%s0 + $0x1c] sm:$0xf]
  %v56 = vld [vmem:[%s0 + $0x20] sm:$0xf]
  %v57 = vld [vmem:[%s0 + $0x24] sm:$0xf]
  %v58 = vld [vmem:[%s0 + $0x28] sm:$0xf]
  %v59 = vld [vmem:[%s0 + $0x2c] sm:$0xf]
  %v60 = vld [vmem:[%s0 + $0x30] sm:$0xf]
  %v61 = vld [vmem:[%s0 + $0x34] sm:$0xf]
  %v62 = vld [vmem:[%s0 + $0x38] sm:$0xf]
  %v63 = vld [vmem:[%s0 + $0x3c] sm:$0xf]
  %v64 = vld [vmem:[%s1] sm:$0xf]
  %v65 = vld [vmem:[%s1 + $0x4] sm:$0xf]
  %v66 = vld [vmem:[%s1 + $0x8] sm:$0xf]
  %v67 = vld [vmem:[%s1 + $0xc] sm:$0xf]
  %v68 = vld [vmem:[%s1 + $0x10] sm:$0xf]
  %v69 = vld [vmem:[%s1 + $0x14] sm:$0xf]
  %v70 = vld [vmem:[%s1 + $0x18] sm:$0xf]
  %v71 = vld [vmem:[%s1 + $0x1c] sm:$0xf]
  %v72 = vld [vmem:[%s1 + $0x20] sm:$0xf]
  %v73 = vld [vmem:[%s1 + $0x24] sm:$0xf]
  %v74 = vld [vmem:[%s1 + $0x28] sm:$0xf]
  %v75 = vld [vmem:[%s1 + $0x2c] sm:$0xf]
  %v76 = vld [vmem:[%s1 + $0x30] sm:$0xf]
  %v77 = vld [vmem:[%s1 + $0x34] sm:$0xf]
  %v78 = vld [vmem:[%s1 + $0x38] sm:$0xf]
  %v79 = vld [vmem:[%s1 + $0x3c] sm:$0xf]
  %v96 = vunpack.c.l.b16 %v48
  %v97 = vunpack.c.l.b16 %v49
  %v98 = vunpack.c.l.b16 %v50
  %v99 = vunpack.c.l.b16 %v51
  %v100 = vunpack.c.l.b16 %v52
  %v101 = vunpack.c.l.b16 %v53
  %v102 = vunpack.c.l.b16 %v54
  %v103 = vunpack.c.l.b16 %v55
  %v104 = vunpack.c.l.b16 %v56
  %v105 = vunpack.c.l.b16 %v57
  %v106 = vunpack.c.l.b16 %v58
  %v107 = vunpack.c.l.b16 %v59
  %v108 = vunpack.c.l.b16 %v60
  %v109 = vunpack.c.l.b16 %v61
  %v110 = vunpack.c.l.b16 %v62
  %v111 = vunpack.c.l.b16 %v63
  %v112 = vpack.c.b16 %v97, %v96
  %v113 = vpack.c.b16 %v99, %v98
  %v114 = vpack.c.b16 %v101, %v100
  %v115 = vpack.c.b16 %v103, %v102
  %v116 = vpack.c.b16 %v105, %v104
  %v117 = vpack.c.b16 %v107, %v106
  %v118 = vpack.c.b16 %v109, %v108
  %v119 = vpack.c.b16 %v111, %v110
  %v144 = vunpack.c.l.b16 %v64
  %v145 = vunpack.c.l.b16 %v65
  %v146 = vunpack.c.l.b16 %v66
  %v147 = vunpack.c.l.b16 %v67
  %v148 = vunpack.c.l.b16 %v68
  %v149 = vunpack.c.l.b16 %v69
  %v150 = vunpack.c.l.b16 %v70
  %v151 = vunpack.c.l.b16 %v71
  %v152 = vunpack.c.l.b16 %v72
  %v153 = vunpack.c.l.b16 %v73
  %v154 = vunpack.c.l.b16 %v74
  %v155 = vunpack.c.l.b16 %v75
  %v156 = vunpack.c.l.b16 %v76
  %v157 = vunpack.c.l.b16 %v77
  %v158 = vunpack.c.l.b16 %v78
  %v159 = vunpack.c.l.b16 %v79
  %v160 = vpack.c.b16 %v145, %v144
  %v161 = vpack.c.b16 %v147, %v146
  %v162 = vpack.c.b16 %v149, %v148
  %v163 = vpack.c.b16 %v151, %v150
  %v164 = vpack.c.b16 %v153, %v152
  %v165 = vpack.c.b16 %v155, %v154
  %v166 = vpack.c.b16 %v157, %v156
  %v167 = vpack.c.b16 %v159, %v158
  %176 = vmatprep.subr.bf16.mxu0 0
  %177 = vmatpush1.bf16.msra.mxu0 %v160
  %178 = vmatprep.subr.bf16.mxu0 0
  %179 = vmatpush1.bf16.msra.mxu0 %v161
  %180 = vmatprep.subr.bf16.mxu0 0
  %181 = vmatpush1.bf16.msra.mxu0 %v162
  %182 = vmatprep.subr.bf16.mxu0 0
  %183 = vmatpush1.bf16.msra.mxu0 %v163
  %184 = vmatprep.subr.bf16.mxu0 0
  %185 = vmatpush1.bf16.msra.mxu0 %v164
  %186 = vmatprep.subr.bf16.mxu0 0
  %187 = vmatpush1.bf16.msra.mxu0 %v165
  %188 = vmatprep.subr.bf16.mxu0 0
  %189 = vmatpush1.bf16.msra.mxu0 %v166
  %190 = vmatprep.subr.bf16.mxu0 0
  %191 = vmatpush1.bf16.msra.mxu0 %v167
  %192 = vmatprep.subr.bf16.mxu0 0
  %193 = vmatpush1.bf16.msra.mxu0 0
  %194 = vmatprep.subr.bf16.mxu0 0
  %195 = vmatpush1.bf16.msra.mxu0 0
  %196 = vmatprep.subr.bf16.mxu0 0
  %197 = vmatpush1.bf16.msra.mxu0 0
  %198 = vmatprep.subr.bf16.mxu0 0
  %199 = vmatpush1.bf16.msra.mxu0 0
  %200 = vmatprep.subr.bf16.mxu0 0
  %201 = vmatpush1.bf16.msra.mxu0 0
  %202 = vmatprep.subr.bf16.mxu0 0
  %203 = vmatpush1.bf16.msra.mxu0 0
  %204 = vmatprep.subr.bf16.mxu0 0
  %205 = vmatpush1.bf16.msra.mxu0 0
  %206 = vmatprep.subr.bf16.mxu0 0
  %207 = vmatpush1.bf16.msra.mxu0 0
  %208 = vmatprep.mubr.bf16.mxu0 0
  %209 = vmatmul.mubr.bf16.gmra.mrb[0].mxu0 %v112
  %v210 = vpop.f32.mrb[0].mxu0
  %v211 = vadd.f32 0.0, %v210
  %v212 = vpop.f32.mrb[0].mxu0
  %v213 = vpop.f32.mrb[0].mxu0
  %v214 = vadd.f32 0.0, %v213
  %v215 = vpop.f32.mrb[0].mxu0
  %216 = vmatprep.mubr.bf16.mxu0 0
  %217 = vmatmul.mubr.bf16.gmra.mrb[0].mxu0 %v113
  %v218 = vpop.f32.mrb[0].mxu0
  %v219 = vadd.f32 0.0, %v218
  %v220 = vpop.f32.mrb[0].mxu0
  %v221 = vpop.f32.mrb[0].mxu0
  %v222 = vadd.f32 0.0, %v221
  %v223 = vpop.f32.mrb[0].mxu0
  %224 = vmatprep.mubr.bf16.mxu0 0
  %225 = vmatmul.mubr.bf16.gmra.mrb[0].mxu0 %v114
  %v226 = vpop.f32.mrb[0].mxu0
  %v227 = vadd.f32 0.0, %v226
  %v228 = vpop.f32.mrb[0].mxu0
  %v229 = vpop.f32.mrb[0].mxu0
  %v230 = vadd.f32 0.0, %v229
  %v231 = vpop.f32.mrb[0].mxu0
  %232 = vmatprep.mubr.bf16.mxu0 0
  %233 = vmatmul.mubr.bf16.gmra.mrb[0].mxu0 %v115
  %v234 = vpop.f32.mrb[0].mxu0
  %v235 = vadd.f32 0.0, %v234
  %v236 = vpop.f32.mrb[0].mxu0
  %v237 = vpop.f32.mrb[0].mxu0
  %v238 = vadd.f32 0.0, %v237
  %v239 = vpop.f32.mrb[0].mxu0
  %240 = vmatprep.mubr.bf16.mxu0 0
  %241 = vmatmul.mubr.bf16.gmra.mrb[0].mxu0 %v116
  %v242 = vpop.f32.mrb[0].mxu0
  %v243 = vadd.f32 0.0, %v242
  %v244 = vpop.f32.mrb[0].mxu0
  %v245 = vpop.f32.mrb[0].mxu0
  %v246 = vadd.f32 0.0, %v245
  %v247 = vpop.f32.mrb[0].mxu0
  %248 = vmatprep.mubr.bf16.mxu0 0
  %249 = vmatmul.mubr.bf16.gmra.mrb[0].mxu0 %v117
  %v250 = vpop.f32.mrb[0].mxu0
  %v251 = vadd.f32 0.0, %v250
  %v252 = vpop.f32.mrb[0].mxu0
  %v253 = vpop.f32.mrb[0].mxu0
  %v254 = vadd.f32 0.0, %v253
  %v255 = vpop.f32.mrb[0].mxu0
  %256 = vmatprep.mubr.bf16.mxu0 0
  %257 = vmatmul.mubr.bf16.gmra.mrb[0].mxu0 %v118
  %v258 = vpop.f32.mrb[0].mxu0
  %v259 = vadd.f32 0.0, %v258
  %v260 = vpop.f32.mrb[0].mxu0
  %v261 = vpop.f32.mrb[0].mxu0
  %v262 = vadd.f32 0.0, %v261
  %v263 = vpop.f32.mrb[0].mxu0
  %264 = vmatprep.mubr.bf16.mxu0 0
  %265 = vmatmul.mubr.bf16.gmra.mrb[0].mxu0 %v119
  %v266 = vpop.f32.mrb[0].mxu0
  %v267 = vadd.f32 0.0, %v266
  %v268 = vpop.f32.mrb[0].mxu0
  %v269 = vpop.f32.mrb[0].mxu0
  %v270 = vadd.f32 0.0, %v269
  %v271 = vpop.f32.mrb[0].mxu0
  %272 = vdwg.mxu0
  %v273 = vadd.f32 %v32, %v211
  %v274 = vadd.f32 %v33, %v214
  %v275 = vadd.f32 %v34, %v219
  %v276 = vadd.f32 %v35, %v222
  %v277 = vadd.f32 %v36, %v227
  %v278 = vadd.f32 %v37, %v230
  %v279 = vadd.f32 %v38, %v235
  %v280 = vadd.f32 %v39, %v238
  %v281 = vadd.f32 %v40, %v243
  %v282 = vadd.f32 %v41, %v246
  %v283 = vadd.f32 %v42, %v251
  %v284 = vadd.f32 %v43, %v254
  %v285 = vadd.f32 %v44, %v259
  %v286 = vadd.f32 %v45, %v262
  %v287 = vadd.f32 %v46, %v267
  %v288 = vadd.f32 %v47, %v270
  %289 = vst [vmem:[#allocation2] sm:$0xff] %v273
  %290 = vst [vmem:[#allocation2 + $0x8] sm:$0xff] %v274
  %291 = vst [vmem:[#allocation2 + $0x10] sm:$0xff] %v275
  %292 = vst [vmem:[#allocation2 + $0x18] sm:$0xff] %v276
  %293 = vst [vmem:[#allocation2 + $0x20] sm:$0xff] %v277
  %294 = vst [vmem:[#allocation2 + $0x28] sm:$0xff] %v278
  %295 = vst [vmem:[#allocation2 + $0x30] sm:$0xff] %v279
  %296 = vst [vmem:[#allocation2 + $0x38] sm:$0xff] %v280
  %297 = vst [vmem:[#allocation2 + $0x40] sm:$0xff] %v281
  %298 = vst [vmem:[#allocation2 + $0x48] sm:$0xff] %v282
  %299 = vst [vmem:[#allocation2 + $0x50] sm:$0xff] %v283
  %300 = vst [vmem:[#allocation2 + $0x58] sm:$0xff] %v284
  %301 = vst [vmem:[#allocation2 + $0x60] sm:$0xff] %v285
  %302 = vst [vmem:[#allocation2 + $0x68] sm:$0xff] %v286
  %303 = vst [vmem:[#allocation2 + $0x70] sm:$0xff] %v287
  %304 = vst [vmem:[#allocation2 + $0x78] sm:$0xff] %v288
  // Predicated region
  $region14: #{gcn_dcaug_forward.4} parent=0 // pred_check
    %p305 = pneg %p12
  $region15: #{gcn_dcaug_forward.4} parent=0 // pred_check_branch
    %307 = sbr.rel (%p305) target = $region17
  $region16: #{gcn_dcaug_forward.4} parent=0 // pred_region
    %v308 = vld [vmem:[#allocation2] sm:$0xff]
    %v309 = vld [vmem:[#allocation2 + $0x8] sm:$0xff]
    %v310 = vld [vmem:[#allocation2 + $0x10] sm:$0xff]
    %v311 = vld [vmem:[#allocation2 + $0x18] sm:$0xff]
    %v312 = vld [vmem:[#allocation2 + $0x20] sm:$0xff]
    %v313 = vld [vmem:[#allocation2 + $0x28] sm:$0xff]
    %v314 = vld [vmem:[#allocation2 + $0x30] sm:$0xff]
    %v315 = vld [vmem:[#allocation2 + $0x38] sm:$0xff]
    %v316 = vld [vmem:[#allocation2 + $0x40] sm:$0xff]
    %v317 = vld [vmem:[#allocation2 + $0x48] sm:$0xff]
    %v318 = vld [vmem:[#allocation2 + $0x50] sm:$0xff]
    %v319 = vld [vmem:[#allocation2 + $0x58] sm:$0xff]
    %v320 = vld [vmem:[#allocation2 + $0x60] sm:$0xff]
    %v321 = vld [vmem:[#allocation2 + $0x68] sm:$0xff]
    %v322 = vld [vmem:[#allocation2 + $0x70] sm:$0xff]
    %v323 = vld [vmem:[#allocation2 + $0x78] sm:$0xff]
    %v324 = vpack.c.bf16 %v309, %v308
    %v325 = vpack.c.bf16 %v311, %v310
    %v326 = vpack.c.bf16 %v313, %v312
    %v327 = vpack.c.bf16 %v315, %v314
    %v328 = vpack.c.bf16 %v317, %v316
    %v329 = vpack.c.bf16 %v319, %v318
    %v330 = vpack.c.bf16 %v321, %v320
    %v331 = vpack.c.bf16 %v323, %v322
    %v340 = vunpack.c.l.b16 %v324
    %v341 = vunpack.c.h.b16 %v324
    %v342 = vunpack.c.l.b16 %v325
    %v343 = vunpack.c.h.b16 %v325
    %v344 = vunpack.c.l.b16 %v326
    %v345 = vunpack.c.h.b16 %v326
    %v346 = vunpack.c.l.b16 %v327
    %v347 = vunpack.c.h.b16 %v327
    %v348 = vunpack.c.l.b16 %v328
    %v349 = vunpack.c.h.b16 %v328
    %v350 = vunpack.c.l.b16 %v329
    %v351 = vunpack.c.h.b16 %v329
    %v352 = vunpack.c.l.b16 %v330
    %v353 = vunpack.c.h.b16 %v330
    %v354 = vunpack.c.l.b16 %v331
    %v355 = vunpack.c.h.b16 %v331
    %v356 = vpack.c.b16 %v340, %v340
    %v357 = vpack.c.b16 %v341, %v341
    %v358 = vpack.c.b16 %v342, %v342
    %v359 = vpack.c.b16 %v343, %v343
    %v360 = vpack.c.b16 %v344, %v344
    %v361 = vpack.c.b16 %v345, %v345
    %v362 = vpack.c.b16 %v346, %v346
    %v363 = vpack.c.b16 %v347, %v347
    %v364 = vpack.c.b16 %v348, %v348
    %v365 = vpack.c.b16 %v349, %v349
    %v366 = vpack.c.b16 %v350, %v350
    %v367 = vpack.c.b16 %v351, %v351
    %v368 = vpack.c.b16 %v352, %v352
    %v369 = vpack.c.b16 %v353, %v353
    %v370 = vpack.c.b16 %v354, %v354
    %v371 = vpack.c.b16 %v355, %v355
    %388 = vst [vmem:[%s2] sm:$0xf] %v356
    %389 = vst [vmem:[%s2 + $0x4] sm:$0xf] %v357
    %390 = vst [vmem:[%s2 + $0x8] sm:$0xf] %v358
    %391 = vst [vmem:[%s2 + $0xc] sm:$0xf] %v359
    %392 = vst [vmem:[%s2 + $0x10] sm:$0xf] %v360
    %393 = vst [vmem:[%s2 + $0x14] sm:$0xf] %v361
    %394 = vst [vmem:[%s2 + $0x18] sm:$0xf] %v362
    %395 = vst [vmem:[%s2 + $0x1c] sm:$0xf] %v363
    %396 = vst [vmem:[%s2 + $0x20] sm:$0xf] %v364
    %397 = vst [vmem:[%s2 + $0x24] sm:$0xf] %v365
    %398 = vst [vmem:[%s2 + $0x28] sm:$0xf] %v366
    %399 = vst [vmem:[%s2 + $0x2c] sm:$0xf] %v367
    %400 = vst [vmem:[%s2 + $0x30] sm:$0xf] %v368
    %401 = vst [vmem:[%s2 + $0x34] sm:$0xf] %v369
    %402 = vst [vmem:[%s2 + $0x38] sm:$0xf] %v370
    %403 = vst [vmem:[%s2 + $0x3c] sm:$0xf] %v371
  $region17: #{gcn_dcaug_forward.4} parent=0 // pred_fallthru
    _
  // Predicated region
  $region18: #{gcn_dcaug_forward.4} parent=0 // pred_check
    _
  $region19: #{gcn_dcaug_forward.4} parent=0 // pred_check_branch
    %405 = sbr.rel (0) target = $region21
  $region20: #{gcn_dcaug_forward.4} parent=0 // pred_region
    _
  $region21: #{gcn_dcaug_forward.4} parent=0 // pred_fallthru
    _
  // Predicated region
  $region22: #{gcn_dcaug_forward.4} parent=0 // pred_check
    _
  $region23: #{gcn_dcaug_forward.4} parent=0 // pred_check_branch
    %407 = sbr.rel (0) target = $region25
  $region24: #{gcn_dcaug_forward.4} parent=0 // pred_region
    _
  $region25: #{gcn_dcaug_forward.4} parent=0 // pred_fallthru
    _

// kernel: gcn_dcaug_forward.5
$region0: #{gcn_dcaug_forward.5}
  #allocation0 [shape = 'u32[]', space=smem, size = 0x4, offset = 0x4, fixed_abs, tag = 'smem constant byte address 0x4 - core index']
  #allocation1 [shape = 'u32[144,128]{1,0:T(1,128)}', space=vmem, size = 0x12000, scoped, tag = 'internal scratch']
  #allocation2 [shape = 'f32[128,128]{1,0:T(8,128)}', space=vmem, size = 0x10000, scoped, tag = 'scratch operand']
  %s0 = inlined_call_operand.vmem [shape: bf16[128,128], index: 0, kind: input, shape index: {}]
  %s1 = inlined_call_operand.vmem [shape: bf16[128,128], index: 1, kind: input, shape index: {}]
  %s2 = inlined_call_operand.vmem [shape: f32[1,128], index: 2, kind: input, shape index: {}]
  %s3 = inlined_call_operand.vmem [shape: bf16[128,128], index: 3, kind: output, shape index: {}]
  %s4 = sld [smem:[#allocation0]]
  $region30: #{gcn_dcaug_forward.5} parent=0
    _
  %s6 = ssub.s32 1, %s4
  %s7 = scalar_select 0, %s6, %s4
  // Predicated region
  $region2: #{gcn_dcaug_forward.5} parent=0 // pred_check
    _
  $region3: #{gcn_dcaug_forward.5} parent=0 // pred_check_branch
    %9 = sbr.rel (0) target = $region5
  $region4: #{gcn_dcaug_forward.5} parent=0 // pred_region
    _
  $region5: #{gcn_dcaug_forward.5} parent=0 // pred_fallthru
    _
  // Predicated region
  $region6: #{gcn_dcaug_forward.5} parent=0 // pred_check
    _
  $region7: #{gcn_dcaug_forward.5} parent=0 // pred_check_branch
    %11 = sbr.rel (0) target = $region9
  $region8: #{gcn_dcaug_forward.5} parent=0 // pred_region
    _
  $region9: #{gcn_dcaug_forward.5} parent=0 // pred_fallthru
    _
  // Predicated region
  $region10: #{gcn_dcaug_forward.5} parent=0 // pred_check
    _
  $region11: #{gcn_dcaug_forward.5} parent=0 // pred_check_branch
    %13 = sbr.rel (0) target = $region13
  $region12: #{gcn_dcaug_forward.5} parent=0 // pred_region
    _
  $region13: #{gcn_dcaug_forward.5} parent=0 // pred_fallthru
    _
  %p15 = scmp.eq.s32.totalorder 0, 0
  // Predicated region
  $region14: #{gcn_dcaug_forward.5} parent=0 // pred_check
    %p16 = pneg %p15
  $region15: #{gcn_dcaug_forward.5} parent=0 // pred_check_branch
    %18 = sbr.rel (%p16) target = $region17
  $region16: #{gcn_dcaug_forward.5} parent=0 // pred_region
    %19 = vst [vmem:[#allocation2] sm:$0xff] 0.0
    %20 = vst [vmem:[#allocation2 + $0x8] sm:$0xff] 0.0
    %21 = vst [vmem:[#allocation2 + $0x10] sm:$0xff] 0.0
    %22 = vst [vmem:[#allocation2 + $0x18] sm:$0xff] 0.0
    %23 = vst [vmem:[#allocation2 + $0x20] sm:$0xff] 0.0
    %24 = vst [vmem:[#allocation2 + $0x28] sm:$0xff] 0.0
    %25 = vst [vmem:[#allocation2 + $0x30] sm:$0xff] 0.0
    %26 = vst [vmem:[#allocation2 + $0x38] sm:$0xff] 0.0
    %27 = vst [vmem:[#allocation2 + $0x40] sm:$0xff] 0.0
    %28 = vst [vmem:[#allocation2 + $0x48] sm:$0xff] 0.0
    %29 = vst [vmem:[#allocation2 + $0x50] sm:$0xff] 0.0
    %30 = vst [vmem:[#allocation2 + $0x58] sm:$0xff] 0.0
    %31 = vst [vmem:[#allocation2 + $0x60] sm:$0xff] 0.0
    %32 = vst [vmem:[#allocation2 + $0x68] sm:$0xff] 0.0
    %33 = vst [vmem:[#allocation2 + $0x70] sm:$0xff] 0.0
    %34 = vst [vmem:[#allocation2 + $0x78] sm:$0xff] 0.0
  $region17: #{gcn_dcaug_forward.5} parent=0 // pred_fallthru
    _
  %v35 = vld [vmem:[#allocation2] sm:$0xff]
  %v36 = vld [vmem:[#allocation2 + $0x8] sm:$0xff]
  %v37 = vld [vmem:[#allocation2 + $0x10] sm:$0xff]
  %v38 = vld [vmem:[#allocation2 + $0x18] sm:$0xff]
  %v39 = vld [vmem:[#allocation2 + $0x20] sm:$0xff]
  %v40 = vld [vmem:[#allocation2 + $0x28] sm:$0xff]
  %v41 = vld [vmem:[#allocation2 + $0x30] sm:$0xff]
  %v42 = vld [vmem:[#allocation2 + $0x38] sm:$0xff]
  %v43 = vld [vmem:[#allocation2 + $0x40] sm:$0xff]
  %v44 = vld [vmem:[#allocation2 + $0x48] sm:$0xff]
  %v45 = vld [vmem:[#allocation2 + $0x50] sm:$0xff]
  %v46 = vld [vmem:[#allocation2 + $0x58] sm:$0xff]
  %v47 = vld [vmem:[#allocation2 + $0x60] sm:$0xff]
  %v48 = vld [vmem:[#allocation2 + $0x68] sm:$0xff]
  %v49 = vld [vmem:[#allocation2 + $0x70] sm:$0xff]
  %v50 = vld [vmem:[#allocation2 + $0x78] sm:$0xff]
  %v51 = vld [vmem:[%s0] sm:$0xf]
  %v52 = vld [vmem:[%s0 + $0x4] sm:$0xf]
  %v53 = vld [vmem:[%s0 + $0x8] sm:$0xf]
  %v54 = vld [vmem:[%s0 + $0xc] sm:$0xf]
  %v55 = vld [vmem:[%s0 + $0x10] sm:$0xf]
  %v56 = vld [vmem:[%s0 + $0x14] sm:$0xf]
  %v57 = vld [vmem:[%s0 + $0x18] sm:$0xf]
  %v58 = vld [vmem:[%s0 + $0x1c] sm:$0xf]
  %v59 = vld [vmem:[%s0 + $0x20] sm:$0xf]
  %v60 = vld [vmem:[%s0 + $0x24] sm:$0xf]
  %v61 = vld [vmem:[%s0 + $0x28] sm:$0xf]
  %v62 = vld [vmem:[%s0 + $0x2c] sm:$0xf]
  %v63 = vld [vmem:[%s0 + $0x30] sm:$0xf]
  %v64 = vld [vmem:[%s0 + $0x34] sm:$0xf]
  %v65 = vld [vmem:[%s0 + $0x38] sm:$0xf]
  %v66 = vld [vmem:[%s0 + $0x3c] sm:$0xf]
  %s67 = smul.u32 0, 128
  %s68 = sshra.s32 %s67, 3
  %s69 = sand.u32 %s67, 7
  %s70 = smul.addr %s68, 4
  %s71 = scalar_lea.vmem %s1, %s70
  %v72 = vld [vmem:[%s71] sm:$0xf]
  %v73 = vld [vmem:[%s71 + $0x4] sm:$0xf]
  %v74 = vld [vmem:[%s71 + $0x8] sm:$0xf]
  %v75 = vld [vmem:[%s71 + $0xc] sm:$0xf]
  %v76 = vld [vmem:[%s71 + $0x10] sm:$0xf]
  %v77 = vld [vmem:[%s71 + $0x14] sm:$0xf]
  %v78 = vld [vmem:[%s71 + $0x18] sm:$0xf]
  %v79 = vld [vmem:[%s71 + $0x1c] sm:$0xf]
  %v80 = vld [vmem:[%s71 + $0x20] sm:$0xf]
  %v81 = vld [vmem:[%s71 + $0x24] sm:$0xf]
  %v82 = vld [vmem:[%s71 + $0x28] sm:$0xf]
  %v83 = vld [vmem:[%s71 + $0x2c] sm:$0xf]
  %v84 = vld [vmem:[%s71 + $0x30] sm:$0xf]
  %v85 = vld [vmem:[%s71 + $0x34] sm:$0xf]
  %v86 = vld [vmem:[%s71 + $0x38] sm:$0xf]
  %v87 = vld [vmem:[%s71 + $0x3c] sm:$0xf]
  %v104 = vunpack.c.l.b16 %v51
  %v105 = vunpack.c.l.b16 %v52
  %v106 = vunpack.c.l.b16 %v53
  %v107 = vunpack.c.l.b16 %v54
  %v108 = vunpack.c.l.b16 %v55
  %v109 = vunpack.c.l.b16 %v56
  %v110 = vunpack.c.l.b16 %v57
  %v111 = vunpack.c.l.b16 %v58
  %v112 = vunpack.c.l.b16 %v59
  %v113 = vunpack.c.l.b16 %v60
  %v114 = vunpack.c.l.b16 %v61
  %v115 = vunpack.c.l.b16 %v62
  %v116 = vunpack.c.l.b16 %v63
  %v117 = vunpack.c.l.b16 %v64
  %v118 = vunpack.c.l.b16 %v65
  %v119 = vunpack.c.l.b16 %v66
  %v120 = vpack.c.b16 %v105, %v104
  %v121 = vpack.c.b16 %v107, %v106
  %v122 = vpack.c.b16 %v109, %v108
  %v123 = vpack.c.b16 %v111, %v110
  %v124 = vpack.c.b16 %v113, %v112
  %v125 = vpack.c.b16 %v115, %v114
  %v126 = vpack.c.b16 %v117, %v116
  %v127 = vpack.c.b16 %v119, %v118
  %v152 = vunpack.c.l.b16 %v72
  %v153 = vunpack.c.l.b16 %v73
  %v154 = vunpack.c.l.b16 %v74
  %v155 = vunpack.c.l.b16 %v75
  %v156 = vunpack.c.l.b16 %v76
  %v157 = vunpack.c.l.b16 %v77
  %v158 = vunpack.c.l.b16 %v78
  %v159 = vunpack.c.l.b16 %v79
  %v160 = vunpack.c.l.b16 %v80
  %v161 = vunpack.c.l.b16 %v81
  %v162 = vunpack.c.l.b16 %v82
  %v163 = vunpack.c.l.b16 %v83
  %v164 = vunpack.c.l.b16 %v84
  %v165 = vunpack.c.l.b16 %v85
  %v166 = vunpack.c.l.b16 %v86
  %v167 = vunpack.c.l.b16 %v87
  %v168 = vpack.c.b16 %v153, %v152
  %v169 = vpack.c.b16 %v155, %v154
  %v170 = vpack.c.b16 %v157, %v156
  %v171 = vpack.c.b16 %v159, %v158
  %v172 = vpack.c.b16 %v161, %v160
  %v173 = vpack.c.b16 %v163, %v162
  %v174 = vpack.c.b16 %v165, %v164
  %v175 = vpack.c.b16 %v167, %v166
  %184 = vmatprep.subr.bf16.mxu0 0
  %185 = vmatpush1.bf16.msra.mxu0 %v168
  %186 = vmatprep.subr.bf16.mxu0 0
  %187 = vmatpush1.bf16.msra.mxu0 %v169
  %188 = vmatprep.subr.bf16.mxu0 0
  %189 = vmatpush1.bf16.msra.mxu0 %v170
  %190 = vmatprep.subr.bf16.mxu0 0
  %191 = vmatpush1.bf16.msra.mxu0 %v171
  %192 = vmatprep.subr.bf16.mxu0 0
  %193 = vmatpush1.bf16.msra.mxu0 %v172
  %194 = vmatprep.subr.bf16.mxu0 0
  %195 = vmatpush1.bf16.msra.mxu0 %v173
  %196 = vmatprep.subr.bf16.mxu0 0
  %197 = vmatpush1.bf16.msra.mxu0 %v174
  %198 = vmatprep.subr.bf16.mxu0 0
  %199 = vmatpush1.bf16.msra.mxu0 %v175
  %200 = vmatprep.subr.bf16.mxu0 0
  %201 = vmatpush1.bf16.msra.mxu0 0
  %202 = vmatprep.subr.bf16.mxu0 0
  %203 = vmatpush1.bf16.msra.mxu0 0
  %204 = vmatprep.subr.bf16.mxu0 0
  %205 = vmatpush1.bf16.msra.mxu0 0
  %206 = vmatprep.subr.bf16.mxu0 0
  %207 = vmatpush1.bf16.msra.mxu0 0
  %208 = vmatprep.subr.bf16.mxu0 0
  %209 = vmatpush1.bf16.msra.mxu0 0
  %210 = vmatprep.subr.bf16.mxu0 0
  %211 = vmatpush1.bf16.msra.mxu0 0
  %212 = vmatprep.subr.bf16.mxu0 0
  %213 = vmatpush1.bf16.msra.mxu0 0
  %214 = vmatprep.subr.bf16.mxu0 0
  %215 = vmatpush1.bf16.msra.mxu0 0
  %216 = vmatprep.mubr.bf16.mxu0 0
  %217 = vmatmul.mubr.bf16.gmra.mrb[0].mxu0 %v120
  %v218 = vpop.f32.mrb[0].mxu0
  %v219 = vadd.f32 0.0, %v218
  %v220 = vpop.f32.mrb[0].mxu0
  %v221 = vpop.f32.mrb[0].mxu0
  %v222 = vadd.f32 0.0, %v221
  %v223 = vpop.f32.mrb[0].mxu0
  %224 = vmatprep.mubr.bf16.mxu0 0
  %225 = vmatmul.mubr.bf16.gmra.mrb[0].mxu0 %v121
  %v226 = vpop.f32.mrb[0].mxu0
  %v227 = vadd.f32 0.0, %v226
  %v228 = vpop.f32.mrb[0].mxu0
  %v229 = vpop.f32.mrb[0].mxu0
  %v230 = vadd.f32 0.0, %v229
  %v231 = vpop.f32.mrb[0].mxu0
  %232 = vmatprep.mubr.bf16.mxu0 0
  %233 = vmatmul.mubr.bf16.gmra.mrb[0].mxu0 %v122
  %v234 = vpop.f32.mrb[0].mxu0
  %v235 = vadd.f32 0.0, %v234
  %v236 = vpop.f32.mrb[0].mxu0
  %v237 = vpop.f32.mrb[0].mxu0
  %v238 = vadd.f32 0.0, %v237
  %v239 = vpop.f32.mrb[0].mxu0
  %240 = vmatprep.mubr.bf16.mxu0 0
  %241 = vmatmul.mubr.bf16.gmra.mrb[0].mxu0 %v123
  %v242 = vpop.f32.mrb[0].mxu0
  %v243 = vadd.f32 0.0, %v242
  %v244 = vpop.f32.mrb[0].mxu0
  %v245 = vpop.f32.mrb[0].mxu0
  %v246 = vadd.f32 0.0, %v245
  %v247 = vpop.f32.mrb[0].mxu0
  %248 = vmatprep.mubr.bf16.mxu0 0
  %249 = vmatmul.mubr.bf16.gmra.mrb[0].mxu0 %v124
  %v250 = vpop.f32.mrb[0].mxu0
  %v251 = vadd.f32 0.0, %v250
  %v252 = vpop.f32.mrb[0].mxu0
  %v253 = vpop.f32.mrb[0].mxu0
  %v254 = vadd.f32 0.0, %v253
  %v255 = vpop.f32.mrb[0].mxu0
  %256 = vmatprep.mubr.bf16.mxu0 0
  %257 = vmatmul.mubr.bf16.gmra.mrb[0].mxu0 %v125
  %v258 = vpop.f32.mrb[0].mxu0
  %v259 = vadd.f32 0.0, %v258
  %v260 = vpop.f32.mrb[0].mxu0
  %v261 = vpop.f32.mrb[0].mxu0
  %v262 = vadd.f32 0.0, %v261
  %v263 = vpop.f32.mrb[0].mxu0
  %264 = vmatprep.mubr.bf16.mxu0 0
  %265 = vmatmul.mubr.bf16.gmra.mrb[0].mxu0 %v126
  %v266 = vpop.f32.mrb[0].mxu0
  %v267 = vadd.f32 0.0, %v266
  %v268 = vpop.f32.mrb[0].mxu0
  %v269 = vpop.f32.mrb[0].mxu0
  %v270 = vadd.f32 0.0, %v269
  %v271 = vpop.f32.mrb[0].mxu0
  %272 = vmatprep.mubr.bf16.mxu0 0
  %273 = vmatmul.mubr.bf16.gmra.mrb[0].mxu0 %v127
  %v274 = vpop.f32.mrb[0].mxu0
  %v275 = vadd.f32 0.0, %v274
  %v276 = vpop.f32.mrb[0].mxu0
  %v277 = vpop.f32.mrb[0].mxu0
  %v278 = vadd.f32 0.0, %v277
  %v279 = vpop.f32.mrb[0].mxu0
  %280 = vdwg.mxu0
  %v281 = vadd.f32 %v35, %v219
  %v282 = vadd.f32 %v36, %v222
  %v283 = vadd.f32 %v37, %v227
  %v284 = vadd.f32 %v38, %v230
  %v285 = vadd.f32 %v39, %v235
  %v286 = vadd.f32 %v40, %v238
  %v287 = vadd.f32 %v41, %v243
  %v288 = vadd.f32 %v42, %v246
  %v289 = vadd.f32 %v43, %v251
  %v290 = vadd.f32 %v44, %v254
  %v291 = vadd.f32 %v45, %v259
  %v292 = vadd.f32 %v46, %v262
  %v293 = vadd.f32 %v47, %v267
  %v294 = vadd.f32 %v48, %v270
  %v295 = vadd.f32 %v49, %v275
  %v296 = vadd.f32 %v50, %v278
  %297 = vst [vmem:[#allocation2] sm:$0xff] %v281
  %298 = vst [vmem:[#allocation2 + $0x8] sm:$0xff] %v282
  %299 = vst [vmem:[#allocation2 + $0x10] sm:$0xff] %v283
  %300 = vst [vmem:[#allocation2 + $0x18] sm:$0xff] %v284
  %301 = vst [vmem:[#allocation2 + $0x20] sm:$0xff] %v285
  %302 = vst [vmem:[#allocation2 + $0x28] sm:$0xff] %v286
  %303 = vst [vmem:[#allocation2 + $0x30] sm:$0xff] %v287
  %304 = vst [vmem:[#allocation2 + $0x38] sm:$0xff] %v288
  %305 = vst [vmem:[#allocation2 + $0x40] sm:$0xff] %v289
  %306 = vst [vmem:[#allocation2 + $0x48] sm:$0xff] %v290
  %307 = vst [vmem:[#allocation2 + $0x50] sm:$0xff] %v291
  %308 = vst [vmem:[#allocation2 + $0x58] sm:$0xff] %v292
  %309 = vst [vmem:[#allocation2 + $0x60] sm:$0xff] %v293
  %310 = vst [vmem:[#allocation2 + $0x68] sm:$0xff] %v294
  %311 = vst [vmem:[#allocation2 + $0x70] sm:$0xff] %v295
  %312 = vst [vmem:[#allocation2 + $0x78] sm:$0xff] %v296
  // Predicated region
  $region18: #{gcn_dcaug_forward.5} parent=0 // pred_check
    %p313 = pneg %p15
  $region19: #{gcn_dcaug_forward.5} parent=0 // pred_check_branch
    %315 = sbr.rel (%p313) target = $region21
  $region20: #{gcn_dcaug_forward.5} parent=0 // pred_region
    %v316 = vld [vmem:[#allocation2] sm:$0xff]
    %v317 = vld [vmem:[#allocation2 + $0x8] sm:$0xff]
    %v318 = vld [vmem:[#allocation2 + $0x10] sm:$0xff]
    %v319 = vld [vmem:[#allocation2 + $0x18] sm:$0xff]
    %v320 = vld [vmem:[#allocation2 + $0x20] sm:$0xff]
    %v321 = vld [vmem:[#allocation2 + $0x28] sm:$0xff]
    %v322 = vld [vmem:[#allocation2 + $0x30] sm:$0xff]
    %v323 = vld [vmem:[#allocation2 + $0x38] sm:$0xff]
    %v324 = vld [vmem:[#allocation2 + $0x40] sm:$0xff]
    %v325 = vld [vmem:[#allocation2 + $0x48] sm:$0xff]
    %v326 = vld [vmem:[#allocation2 + $0x50] sm:$0xff]
    %v327 = vld [vmem:[#allocation2 + $0x58] sm:$0xff]
    %v328 = vld [vmem:[#allocation2 + $0x60] sm:$0xff]
    %v329 = vld [vmem:[#allocation2 + $0x68] sm:$0xff]
    %v330 = vld [vmem:[#allocation2 + $0x70] sm:$0xff]
    %v331 = vld [vmem:[#allocation2 + $0x78] sm:$0xff]
    %v332 = vld [vmem:[%s2] sm:$0x1]
    %v334 = vlaneseq
    %v335 = vshrl.u32 %v334, 7
    %v336 = vsub.s32 0, %v335
    %v337 = vrot.slane %v332, %v336
    %v339 = vadd.f32 %v316, %v337
    %v340 = vadd.f32 %v317, %v337
    %v341 = vadd.f32 %v318, %v337
    %v342 = vadd.f32 %v319, %v337
    %v343 = vadd.f32 %v320, %v337
    %v344 = vadd.f32 %v321, %v337
    %v345 = vadd.f32 %v322, %v337
    %v346 = vadd.f32 %v323, %v337
    %v347 = vadd.f32 %v324, %v337
    %v348 = vadd.f32 %v325, %v337
    %v349 = vadd.f32 %v326, %v337
    %v350 = vadd.f32 %v327, %v337
    %v351 = vadd.f32 %v328, %v337
    %v352 = vadd.f32 %v329, %v337
    %v353 = vadd.f32 %v330, %v337
    %v354 = vadd.f32 %v331, %v337
    %v355 = vmax.f32 %v339, 0.0
    %v356 = vmax.f32 %v340, 0.0
    %v357 = vmax.f32 %v341, 0.0
    %v358 = vmax.f32 %v342, 0.0
    %v359 = vmax.f32 %v343, 0.0
    %v360 = vmax.f32 %v344, 0.0
    %v361 = vmax.f32 %v345, 0.0
    %v362 = vmax.f32 %v346, 0.0
    %v363 = vmax.f32 %v347, 0.0
    %v364 = vmax.f32 %v348, 0.0
    %v365 = vmax.f32 %v349, 0.0
    %v366 = vmax.f32 %v350, 0.0
    %v367 = vmax.f32 %v351, 0.0
    %v368 = vmax.f32 %v352, 0.0
    %v369 = vmax.f32 %v353, 0.0
    %v370 = vmax.f32 %v354, 0.0
    %v371 = vpack.c.bf16 %v356, %v355
    %v372 = vpack.c.bf16 %v358, %v357
    %v373 = vpack.c.bf16 %v360, %v359
    %v374 = vpack.c.bf16 %v362, %v361
    %v375 = vpack.c.bf16 %v364, %v363
    %v376 = vpack.c.bf16 %v366, %v365
    %v377 = vpack.c.bf16 %v368, %v367
    %v378 = vpack.c.bf16 %v370, %v369
    %v387 = vunpack.c.l.b16 %v371
    %v388 = vunpack.c.h.b16 %v371
    %v389 = vunpack.c.l.b16 %v372
    %v390 = vunpack.c.h.b16 %v372
    %v391 = vunpack.c.l.b16 %v373
    %v392 = vunpack.c.h.b16 %v373
    %v393 = vunpack.c.l.b16 %v374
    %v394 = vunpack.c.h.b16 %v374
    %v395 = vunpack.c.l.b16 %v375
    %v396 = vunpack.c.h.b16 %v375
    %v397 = vunpack.c.l.b16 %v376
    %v398 = vunpack.c.h.b16 %v376
    %v399 = vunpack.c.l.b16 %v377
    %v400 = vunpack.c.h.b16 %v377
    %v401 = vunpack.c.l.b16 %v378
    %v402 = vunpack.c.h.b16 %v378
    %v403 = vpack.c.b16 %v387, %v387
    %v404 = vpack.c.b16 %v388, %v388
    %v405 = vpack.c.b16 %v389, %v389
    %v406 = vpack.c.b16 %v390, %v390
    %v407 = vpack.c.b16 %v391, %v391
    %v408 = vpack.c.b16 %v392, %v392
    %v409 = vpack.c.b16 %v393, %v393
    %v410 = vpack.c.b16 %v394, %v394
    %v411 = vpack.c.b16 %v395, %v395
    %v412 = vpack.c.b16 %v396, %v396
    %v413 = vpack.c.b16 %v397, %v397
    %v414 = vpack.c.b16 %v398, %v398
    %v415 = vpack.c.b16 %v399, %v399
    %v416 = vpack.c.b16 %v400, %v400
    %v417 = vpack.c.b16 %v401, %v401
    %v418 = vpack.c.b16 %v402, %v402
    %435 = vst [vmem:[%s3] sm:$0xf] %v403
    %436 = vst [vmem:[%s3 + $0x4] sm:$0xf] %v404
    %437 = vst [vmem:[%s3 + $0x8] sm:$0xf] %v405
    %438 = vst [vmem:[%s3 + $0xc] sm:$0xf] %v406
    %439 = vst [vmem:[%s3 + $0x10] sm:$0xf] %v407
    %440 = vst [vmem:[%s3 + $0x14] sm:$0xf] %v408
    %441 = vst [vmem:[%s3 + $0x18] sm:$0xf] %v409
    %442 = vst [vmem:[%s3 + $0x1c] sm:$0xf] %v410
    %443 = vst [vmem:[%s3 + $0x20] sm:$0xf] %v411
    %444 = vst [vmem:[%s3 + $0x24] sm:$0xf] %v412
    %445 = vst [vmem:[%s3 + $0x28] sm:$0xf] %v413
    %446 = vst [vmem:[%s3 + $0x2c] sm:$0xf] %v414
    %447 = vst [vmem:[%s3 + $0x30] sm:$0xf] %v415
    %448 = vst [vmem:[%s3 + $0x34] sm:$0xf] %v416
    %449 = vst [vmem:[%s3 + $0x38] sm:$0xf] %v417
    %450 = vst [vmem:[%s3 + $0x3c] sm:$0xf] %v418
  $region21: #{gcn_dcaug_forward.5} parent=0 // pred_fallthru
    _
  // Predicated region
  $region22: #{gcn_dcaug_forward.5} parent=0 // pred_check
    _
  $region23: #{gcn_dcaug_forward.5} parent=0 // pred_check_branch
    %452 = sbr.rel (0) target = $region25
  $region24: #{gcn_dcaug_forward.5} parent=0 // pred_region
    _
  $region25: #{gcn_dcaug_forward.5} parent=0 // pred_fallthru
    _
  // Predicated region
  $region26: #{gcn_dcaug_forward.5} parent=0 // pred_check
    _
  $region27: #{gcn_dcaug_forward.5} parent=0 // pred_check_branch
    %454 = sbr.rel (0) target = $region29
  $region28: #{gcn_dcaug_forward.5} parent=0 // pred_region
    _
  $region29: #{gcn_dcaug_forward.5} parent=0 // pred_fallthru
    _

// kernel: gcn_dcaug_forward.7
$region0: #{gcn_dcaug_forward.7}
  #allocation0 [shape = 'u32[]', space=smem, size = 0x4, offset = 0x4, fixed_abs, tag = 'smem constant byte address 0x4 - core index']
  #allocation1 [shape = 'u32[144,128]{1,0:T(1,128)}', space=vmem, size = 0x12000, scoped, tag = 'internal scratch']
  %s0 = inlined_call_operand.vmem [shape: bf16[128,128], index: 0, kind: input, shape index: {}]
  %s1 = inlined_call_operand.vmem [shape: bf16[128,128], index: 1, kind: input, shape index: {}]
  %s2 = inlined_call_operand.vmem [shape: f32[1,128], index: 2, kind: input, shape index: {}]
  %s3 = inlined_call_operand.vmem [shape: f32[128,128], index: 3, kind: output, shape index: {}]
  %s4 = sld [smem:[#allocation0]]
  $region30: #{gcn_dcaug_forward.7} parent=0
    _
  %s6 = ssub.s32 1, %s4
  %s7 = scalar_select 0, %s6, %s4
  // Predicated region
  $region2: #{gcn_dcaug_forward.7} parent=0 // pred_check
    _
  $region3: #{gcn_dcaug_forward.7} parent=0 // pred_check_branch
    %9 = sbr.rel (0) target = $region5
  $region4: #{gcn_dcaug_forward.7} parent=0 // pred_region
    _
  $region5: #{gcn_dcaug_forward.7} parent=0 // pred_fallthru
    _
  // Predicated region
  $region6: #{gcn_dcaug_forward.7} parent=0 // pred_check
    _
  $region7: #{gcn_dcaug_forward.7} parent=0 // pred_check_branch
    %11 = sbr.rel (0) target = $region9
  $region8: #{gcn_dcaug_forward.7} parent=0 // pred_region
    _
  $region9: #{gcn_dcaug_forward.7} parent=0 // pred_fallthru
    _
  // Predicated region
  $region10: #{gcn_dcaug_forward.7} parent=0 // pred_check
    _
  $region11: #{gcn_dcaug_forward.7} parent=0 // pred_check_branch
    %13 = sbr.rel (0) target = $region13
  $region12: #{gcn_dcaug_forward.7} parent=0 // pred_region
    _
  $region13: #{gcn_dcaug_forward.7} parent=0 // pred_fallthru
    _
  %p15 = scmp.eq.s32.totalorder 0, 0
  // Predicated region
  $region14: #{gcn_dcaug_forward.7} parent=0 // pred_check
    %p16 = pneg %p15
  $region15: #{gcn_dcaug_forward.7} parent=0 // pred_check_branch
    %18 = sbr.rel (%p16) target = $region17
  $region16: #{gcn_dcaug_forward.7} parent=0 // pred_region
    %19 = vst [vmem:[%s3] sm:$0xff] 0.0
    %20 = vst [vmem:[%s3 + $0x8] sm:$0xff] 0.0
    %21 = vst [vmem:[%s3 + $0x10] sm:$0xff] 0.0
    %22 = vst [vmem:[%s3 + $0x18] sm:$0xff] 0.0
    %23 = vst [vmem:[%s3 + $0x20] sm:$0xff] 0.0
    %24 = vst [vmem:[%s3 + $0x28] sm:$0xff] 0.0
    %25 = vst [vmem:[%s3 + $0x30] sm:$0xff] 0.0
    %26 = vst [vmem:[%s3 + $0x38] sm:$0xff] 0.0
    %27 = vst [vmem:[%s3 + $0x40] sm:$0xff] 0.0
    %28 = vst [vmem:[%s3 + $0x48] sm:$0xff] 0.0
    %29 = vst [vmem:[%s3 + $0x50] sm:$0xff] 0.0
    %30 = vst [vmem:[%s3 + $0x58] sm:$0xff] 0.0
    %31 = vst [vmem:[%s3 + $0x60] sm:$0xff] 0.0
    %32 = vst [vmem:[%s3 + $0x68] sm:$0xff] 0.0
    %33 = vst [vmem:[%s3 + $0x70] sm:$0xff] 0.0
    %34 = vst [vmem:[%s3 + $0x78] sm:$0xff] 0.0
  $region17: #{gcn_dcaug_forward.7} parent=0 // pred_fallthru
    _
  %v35 = vld [vmem:[%s3] sm:$0xff]
  %v36 = vld [vmem:[%s3 + $0x8] sm:$0xff]
  %v37 = vld [vmem:[%s3 + $0x10] sm:$0xff]
  %v38 = vld [vmem:[%s3 + $0x18] sm:$0xff]
  %v39 = vld [vmem:[%s3 + $0x20] sm:$0xff]
  %v40 = vld [vmem:[%s3 + $0x28] sm:$0xff]
  %v41 = vld [vmem:[%s3 + $0x30] sm:$0xff]
  %v42 = vld [vmem:[%s3 + $0x38] sm:$0xff]
  %v43 = vld [vmem:[%s3 + $0x40] sm:$0xff]
  %v44 = vld [vmem:[%s3 + $0x48] sm:$0xff]
  %v45 = vld [vmem:[%s3 + $0x50] sm:$0xff]
  %v46 = vld [vmem:[%s3 + $0x58] sm:$0xff]
  %v47 = vld [vmem:[%s3 + $0x60] sm:$0xff]
  %v48 = vld [vmem:[%s3 + $0x68] sm:$0xff]
  %v49 = vld [vmem:[%s3 + $0x70] sm:$0xff]
  %v50 = vld [vmem:[%s3 + $0x78] sm:$0xff]
  %v51 = vld [vmem:[%s0] sm:$0xf]
  %v52 = vld [vmem:[%s0 + $0x4] sm:$0xf]
  %v53 = vld [vmem:[%s0 + $0x8] sm:$0xf]
  %v54 = vld [vmem:[%s0 + $0xc] sm:$0xf]
  %v55 = vld [vmem:[%s0 + $0x10] sm:$0xf]
  %v56 = vld [vmem:[%s0 + $0x14] sm:$0xf]
  %v57 = vld [vmem:[%s0 + $0x18] sm:$0xf]
  %v58 = vld [vmem:[%s0 + $0x1c] sm:$0xf]
  %v59 = vld [vmem:[%s0 + $0x20] sm:$0xf]
  %v60 = vld [vmem:[%s0 + $0x24] sm:$0xf]
  %v61 = vld [vmem:[%s0 + $0x28] sm:$0xf]
  %v62 = vld [vmem:[%s0 + $0x2c] sm:$0xf]
  %v63 = vld [vmem:[%s0 + $0x30] sm:$0xf]
  %v64 = vld [vmem:[%s0 + $0x34] sm:$0xf]
  %v65 = vld [vmem:[%s0 + $0x38] sm:$0xf]
  %v66 = vld [vmem:[%s0 + $0x3c] sm:$0xf]
  %s67 = smul.u32 0, 128
  %s68 = sshra.s32 %s67, 3
  %s69 = sand.u32 %s67, 7
  %s70 = smul.addr %s68, 4
  %s71 = scalar_lea.vmem %s1, %s70
  %v72 = vld [vmem:[%s71] sm:$0xf]
  %v73 = vld [vmem:[%s71 + $0x4] sm:$0xf]
  %v74 = vld [vmem:[%s71 + $0x8] sm:$0xf]
  %v75 = vld [vmem:[%s71 + $0xc] sm:$0xf]
  %v76 = vld [vmem:[%s71 + $0x10] sm:$0xf]
  %v77 = vld [vmem:[%s71 + $0x14] sm:$0xf]
  %v78 = vld [vmem:[%s71 + $0x18] sm:$0xf]
  %v79 = vld [vmem:[%s71 + $0x1c] sm:$0xf]
  %v80 = vld [vmem:[%s71 + $0x20] sm:$0xf]
  %v81 = vld [vmem:[%s71 + $0x24] sm:$0xf]
  %v82 = vld [vmem:[%s71 + $0x28] sm:$0xf]
  %v83 = vld [vmem:[%s71 + $0x2c] sm:$0xf]
  %v84 = vld [vmem:[%s71 + $0x30] sm:$0xf]
  %v85 = vld [vmem:[%s71 + $0x34] sm:$0xf]
  %v86 = vld [vmem:[%s71 + $0x38] sm:$0xf]
  %v87 = vld [vmem:[%s71 + $0x3c] sm:$0xf]
  %v104 = vunpack.c.l.b16 %v51
  %v105 = vunpack.c.l.b16 %v52
  %v106 = vunpack.c.l.b16 %v53
  %v107 = vunpack.c.l.b16 %v54
  %v108 = vunpack.c.l.b16 %v55
  %v109 = vunpack.c.l.b16 %v56
  %v110 = vunpack.c.l.b16 %v57
  %v111 = vunpack.c.l.b16 %v58
  %v112 = vunpack.c.l.b16 %v59
  %v113 = vunpack.c.l.b16 %v60
  %v114 = vunpack.c.l.b16 %v61
  %v115 = vunpack.c.l.b16 %v62
  %v116 = vunpack.c.l.b16 %v63
  %v117 = vunpack.c.l.b16 %v64
  %v118 = vunpack.c.l.b16 %v65
  %v119 = vunpack.c.l.b16 %v66
  %v120 = vpack.c.b16 %v105, %v104
  %v121 = vpack.c.b16 %v107, %v106
  %v122 = vpack.c.b16 %v109, %v108
  %v123 = vpack.c.b16 %v111, %v110
  %v124 = vpack.c.b16 %v113, %v112
  %v125 = vpack.c.b16 %v115, %v114
  %v126 = vpack.c.b16 %v117, %v116
  %v127 = vpack.c.b16 %v119, %v118
  %v152 = vunpack.c.l.b16 %v72
  %v153 = vunpack.c.l.b16 %v73
  %v154 = vunpack.c.l.b16 %v74
  %v155 = vunpack.c.l.b16 %v75
  %v156 = vunpack.c.l.b16 %v76
  %v157 = vunpack.c.l.b16 %v77
  %v158 = vunpack.c.l.b16 %v78
  %v159 = vunpack.c.l.b16 %v79
  %v160 = vunpack.c.l.b16 %v80
  %v161 = vunpack.c.l.b16 %v81
  %v162 = vunpack.c.l.b16 %v82
  %v163 = vunpack.c.l.b16 %v83
  %v164 = vunpack.c.l.b16 %v84
  %v165 = vunpack.c.l.b16 %v85
  %v166 = vunpack.c.l.b16 %v86
  %v167 = vunpack.c.l.b16 %v87
  %v168 = vpack.c.b16 %v153, %v152
  %v169 = vpack.c.b16 %v155, %v154
  %v170 = vpack.c.b16 %v157, %v156
  %v171 = vpack.c.b16 %v159, %v158
  %v172 = vpack.c.b16 %v161, %v160
  %v173 = vpack.c.b16 %v163, %v162
  %v174 = vpack.c.b16 %v165, %v164
  %v175 = vpack.c.b16 %v167, %v166
  %184 = vmatprep.subr.bf16.mxu0 0
  %185 = vmatpush1.bf16.msra.mxu0 %v168
  %186 = vmatprep.subr.bf16.mxu0 0
  %187 = vmatpush1.bf16.msra.mxu0 %v169
  %188 = vmatprep.subr.bf16.mxu0 0
  %189 = vmatpush1.bf16.msra.mxu0 %v170
  %190 = vmatprep.subr.bf16.mxu0 0
  %191 = vmatpush1.bf16.msra.mxu0 %v171
  %192 = vmatprep.subr.bf16.mxu0 0
  %193 = vmatpush1.bf16.msra.mxu0 %v172
  %194 = vmatprep.subr.bf16.mxu0 0
  %195 = vmatpush1.bf16.msra.mxu0 %v173
  %196 = vmatprep.subr.bf16.mxu0 0
  %197 = vmatpush1.bf16.msra.mxu0 %v174
  %198 = vmatprep.subr.bf16.mxu0 0
  %199 = vmatpush1.bf16.msra.mxu0 %v175
  %200 = vmatprep.subr.bf16.mxu0 0
  %201 = vmatpush1.bf16.msra.mxu0 0
  %202 = vmatprep.subr.bf16.mxu0 0
  %203 = vmatpush1.bf16.msra.mxu0 0
  %204 = vmatprep.subr.bf16.mxu0 0
  %205 = vmatpush1.bf16.msra.mxu0 0
  %206 = vmatprep.subr.bf16.mxu0 0
  %207 = vmatpush1.bf16.msra.mxu0 0
  %208 = vmatprep.subr.bf16.mxu0 0
  %209 = vmatpush1.bf16.msra.mxu0 0
  %210 = vmatprep.subr.bf16.mxu0 0
  %211 = vmatpush1.bf16.msra.mxu0 0
  %212 = vmatprep.subr.bf16.mxu0 0
  %213 = vmatpush1.bf16.msra.mxu0 0
  %214 = vmatprep.subr.bf16.mxu0 0
  %215 = vmatpush1.bf16.msra.mxu0 0
  %216 = vmatprep.mubr.bf16.mxu0 0
  %217 = vmatmul.mubr.bf16.gmra.mrb[0].mxu0 %v120
  %v218 = vpop.f32.mrb[0].mxu0
  %v219 = vadd.f32 0.0, %v218
  %v220 = vpop.f32.mrb[0].mxu0
  %v221 = vpop.f32.mrb[0].mxu0
  %v222 = vadd.f32 0.0, %v221
  %v223 = vpop.f32.mrb[0].mxu0
  %224 = vmatprep.mubr.bf16.mxu0 0
  %225 = vmatmul.mubr.bf16.gmra.mrb[0].mxu0 %v121
  %v226 = vpop.f32.mrb[0].mxu0
  %v227 = vadd.f32 0.0, %v226
  %v228 = vpop.f32.mrb[0].mxu0
  %v229 = vpop.f32.mrb[0].mxu0
  %v230 = vadd.f32 0.0, %v229
  %v231 = vpop.f32.mrb[0].mxu0
  %232 = vmatprep.mubr.bf16.mxu0 0
  %233 = vmatmul.mubr.bf16.gmra.mrb[0].mxu0 %v122
  %v234 = vpop.f32.mrb[0].mxu0
  %v235 = vadd.f32 0.0, %v234
  %v236 = vpop.f32.mrb[0].mxu0
  %v237 = vpop.f32.mrb[0].mxu0
  %v238 = vadd.f32 0.0, %v237
  %v239 = vpop.f32.mrb[0].mxu0
  %240 = vmatprep.mubr.bf16.mxu0 0
  %241 = vmatmul.mubr.bf16.gmra.mrb[0].mxu0 %v123
  %v242 = vpop.f32.mrb[0].mxu0
  %v243 = vadd.f32 0.0, %v242
  %v244 = vpop.f32.mrb[0].mxu0
  %v245 = vpop.f32.mrb[0].mxu0
  %v246 = vadd.f32 0.0, %v245
  %v247 = vpop.f32.mrb[0].mxu0
  %248 = vmatprep.mubr.bf16.mxu0 0
  %249 = vmatmul.mubr.bf16.gmra.mrb[0].mxu0 %v124
  %v250 = vpop.f32.mrb[0].mxu0
  %v251 = vadd.f32 0.0, %v250
  %v252 = vpop.f32.mrb[0].mxu0
  %v253 = vpop.f32.mrb[0].mxu0
  %v254 = vadd.f32 0.0, %v253
  %v255 = vpop.f32.mrb[0].mxu0
  %256 = vmatprep.mubr.bf16.mxu0 0
  %257 = vmatmul.mubr.bf16.gmra.mrb[0].mxu0 %v125
  %v258 = vpop.f32.mrb[0].mxu0
  %v259 = vadd.f32 0.0, %v258
  %v260 = vpop.f32.mrb[0].mxu0
  %v261 = vpop.f32.mrb[0].mxu0
  %v262 = vadd.f32 0.0, %v261
  %v263 = vpop.f32.mrb[0].mxu0
  %264 = vmatprep.mubr.bf16.mxu0 0
  %265 = vmatmul.mubr.bf16.gmra.mrb[0].mxu0 %v126
  %v266 = vpop.f32.mrb[0].mxu0
  %v267 = vadd.f32 0.0, %v266
  %v268 = vpop.f32.mrb[0].mxu0
  %v269 = vpop.f32.mrb[0].mxu0
  %v270 = vadd.f32 0.0, %v269
  %v271 = vpop.f32.mrb[0].mxu0
  %272 = vmatprep.mubr.bf16.mxu0 0
  %273 = vmatmul.mubr.bf16.gmra.mrb[0].mxu0 %v127
  %v274 = vpop.f32.mrb[0].mxu0
  %v275 = vadd.f32 0.0, %v274
  %v276 = vpop.f32.mrb[0].mxu0
  %v277 = vpop.f32.mrb[0].mxu0
  %v278 = vadd.f32 0.0, %v277
  %v279 = vpop.f32.mrb[0].mxu0
  %280 = vdwg.mxu0
  %v281 = vadd.f32 %v35, %v219
  %v282 = vadd.f32 %v36, %v222
  %v283 = vadd.f32 %v37, %v227
  %v284 = vadd.f32 %v38, %v230
  %v285 = vadd.f32 %v39, %v235
  %v286 = vadd.f32 %v40, %v238
  %v287 = vadd.f32 %v41, %v243
  %v288 = vadd.f32 %v42, %v246
  %v289 = vadd.f32 %v43, %v251
  %v290 = vadd.f32 %v44, %v254
  %v291 = vadd.f32 %v45, %v259
  %v292 = vadd.f32 %v46, %v262
  %v293 = vadd.f32 %v47, %v267
  %v294 = vadd.f32 %v48, %v270
  %v295 = vadd.f32 %v49, %v275
  %v296 = vadd.f32 %v50, %v278
  %297 = vst [vmem:[%s3] sm:$0xff] %v281
  %298 = vst [vmem:[%s3 + $0x8] sm:$0xff] %v282
  %299 = vst [vmem:[%s3 + $0x10] sm:$0xff] %v283
  %300 = vst [vmem:[%s3 + $0x18] sm:$0xff] %v284
  %301 = vst [vmem:[%s3 + $0x20] sm:$0xff] %v285
  %302 = vst [vmem:[%s3 + $0x28] sm:$0xff] %v286
  %303 = vst [vmem:[%s3 + $0x30] sm:$0xff] %v287
  %304 = vst [vmem:[%s3 + $0x38] sm:$0xff] %v288
  %305 = vst [vmem:[%s3 + $0x40] sm:$0xff] %v289
  %306 = vst [vmem:[%s3 + $0x48] sm:$0xff] %v290
  %307 = vst [vmem:[%s3 + $0x50] sm:$0xff] %v291
  %308 = vst [vmem:[%s3 + $0x58] sm:$0xff] %v292
  %309 = vst [vmem:[%s3 + $0x60] sm:$0xff] %v293
  %310 = vst [vmem:[%s3 + $0x68] sm:$0xff] %v294
  %311 = vst [vmem:[%s3 + $0x70] sm:$0xff] %v295
  %312 = vst [vmem:[%s3 + $0x78] sm:$0xff] %v296
  // Predicated region
  $region18: #{gcn_dcaug_forward.7} parent=0 // pred_check
    %p313 = pneg %p15
  $region19: #{gcn_dcaug_forward.7} parent=0 // pred_check_branch
    %315 = sbr.rel (%p313) target = $region21
  $region20: #{gcn_dcaug_forward.7} parent=0 // pred_region
    %v316 = vld [vmem:[%s3] sm:$0xff]
    %v317 = vld [vmem:[%s3 + $0x8] sm:$0xff]
    %v318 = vld [vmem:[%s3 + $0x10] sm:$0xff]
    %v319 = vld [vmem:[%s3 + $0x18] sm:$0xff]
    %v320 = vld [vmem:[%s3 + $0x20] sm:$0xff]
    %v321 = vld [vmem:[%s3 + $0x28] sm:$0xff]
    %v322 = vld [vmem:[%s3 + $0x30] sm:$0xff]
    %v323 = vld [vmem:[%s3 + $0x38] sm:$0xff]
    %v324 = vld [vmem:[%s3 + $0x40] sm:$0xff]
    %v325 = vld [vmem:[%s3 + $0x48] sm:$0xff]
    %v326 = vld [vmem:[%s3 + $0x50] sm:$0xff]
    %v327 = vld [vmem:[%s3 + $0x58] sm:$0xff]
    %v328 = vld [vmem:[%s3 + $0x60] sm:$0xff]
    %v329 = vld [vmem:[%s3 + $0x68] sm:$0xff]
    %v330 = vld [vmem:[%s3 + $0x70] sm:$0xff]
    %v331 = vld [vmem:[%s3 + $0x78] sm:$0xff]
    %v332 = vld [vmem:[%s2] sm:$0x1]
    %v334 = vlaneseq
    %v335 = vshrl.u32 %v334, 7
    %v336 = vsub.s32 0, %v335
    %v337 = vrot.slane %v332, %v336
    %v339 = vadd.f32 %v316, %v337
    %v340 = vadd.f32 %v317, %v337
    %v341 = vadd.f32 %v318, %v337
    %v342 = vadd.f32 %v319, %v337
    %v343 = vadd.f32 %v320, %v337
    %v344 = vadd.f32 %v321, %v337
    %v345 = vadd.f32 %v322, %v337
    %v346 = vadd.f32 %v323, %v337
    %v347 = vadd.f32 %v324, %v337
    %v348 = vadd.f32 %v325, %v337
    %v349 = vadd.f32 %v326, %v337
    %v350 = vadd.f32 %v327, %v337
    %v351 = vadd.f32 %v328, %v337
    %v352 = vadd.f32 %v329, %v337
    %v353 = vadd.f32 %v330, %v337
    %v354 = vadd.f32 %v331, %v337
    %v355 = vmax.f32 %v339, 0.0
    %v356 = vmax.f32 %v340, 0.0
    %v357 = vmax.f32 %v341, 0.0
    %v358 = vmax.f32 %v342, 0.0
    %v359 = vmax.f32 %v343, 0.0
    %v360 = vmax.f32 %v344, 0.0
    %v361 = vmax.f32 %v345, 0.0
    %v362 = vmax.f32 %v346, 0.0
    %v363 = vmax.f32 %v347, 0.0
    %v364 = vmax.f32 %v348, 0.0
    %v365 = vmax.f32 %v349, 0.0
    %v366 = vmax.f32 %v350, 0.0
    %v367 = vmax.f32 %v351, 0.0
    %v368 = vmax.f32 %v352, 0.0
    %v369 = vmax.f32 %v353, 0.0
    %v370 = vmax.f32 %v354, 0.0
    %371 = vst [vmem:[%s3] sm:$0xff] %v355
    %372 = vst [vmem:[%s3 + $0x8] sm:$0xff] %v356
    %373 = vst [vmem:[%s3 + $0x10] sm:$0xff] %v357
    %374 = vst [vmem:[%s3 + $0x18] sm:$0xff] %v358
    %375 = vst [vmem:[%s3 + $0x20] sm:$0xff] %v359
    %376 = vst [vmem:[%s3 + $0x28] sm:$0xff] %v360
    %377 = vst [vmem:[%s3 + $0x30] sm:$0xff] %v361
    %378 = vst [vmem:[%s3 + $0x38] sm:$0xff] %v362
    %379 = vst [vmem:[%s3 + $0x40] sm:$0xff] %v363
    %380 = vst [vmem:[%s3 + $0x48] sm:$0xff] %v364
    %381 = vst [vmem:[%s3 + $0x50] sm:$0xff] %v365
    %382 = vst [vmem:[%s3 + $0x58] sm:$0xff] %v366
    %383 = vst [vmem:[%s3 + $0x60] sm:$0xff] %v367
    %384 = vst [vmem:[%s3 + $0x68] sm:$0xff] %v368
    %385 = vst [vmem:[%s3 + $0x70] sm:$0xff] %v369
    %386 = vst [vmem:[%s3 + $0x78] sm:$0xff] %v370
  $region21: #{gcn_dcaug_forward.7} parent=0 // pred_fallthru
    _
  // Predicated region
  $region22: #{gcn_dcaug_forward.7} parent=0 // pred_check
    _
  $region23: #{gcn_dcaug_forward.7} parent=0 // pred_check_branch
    %388 = sbr.rel (0) target = $region25
  $region24: #{gcn_dcaug_forward.7} parent=0 // pred_region
    _
  $region25: #{gcn_dcaug_forward.7} parent=0 // pred_fallthru
    _
  // Predicated region
  $region26: #{gcn_dcaug_forward.7} parent=0 // pred_check
    _
  $region27: #{gcn_dcaug_forward.7} parent=0 // pred_check_branch
    %390 = sbr.rel (0) target = $region29
  $region28: #{gcn_dcaug_forward.7} parent=0 // pred_region
    _
  $region29: #{gcn_dcaug_forward.7} parent=0 // pred_fallthru
    _

</llo_original>
